<compile_context>
chip_gen: v5e
topology: v5e:2x2
jax: 0.10.0
libtpu: 0.0.40
codegen_flags: <defaults>
</compile_context>

<pallas_src>
import functools

import jax
import jax.numpy as jnp
from jax.experimental import pallas as pl
from jax.experimental.pallas import tpu as pltpu


def _fdc_kernel(feat_ref, lab_ref, mu_ref, linvT_ref, out_ref, *,
                n_valid, num_classes):
    tile = pl.program_id(0)

    feats = feat_ref[...]                 # (TILE_N, Dp) f32
    lab = lab_ref[...]                    # (TILE_N, 1)  i32  (padded rows = -1)
    mu = mu_ref[...]                      # (C, Dp)      f32  (resident)
    linvT = linvT_ref[...]                # (C, Dp, Dp)  bf16 (resident, = L^{-T})

    tile_n = feats.shape[0]

    # Validity mask for rows past the true sample count N.
    row_ids = tile * tile_n + jax.lax.broadcasted_iota(jnp.int32, (tile_n, 1), 0)
    valid = (row_ids < n_valid).astype(jnp.float32)          # (TILE_N, 1)

    total_vec = jnp.zeros((tile_n, 1), jnp.float32)
    label_vec = jnp.zeros((tile_n, 1), jnp.float32)

    # Fully-unrolled per-class loop (straight-line code, LLO-visible).
    # Per class: one bf16 MXU matmul with f32 accumulation.
    for c in range(num_classes):
        diff = feats - mu[c:c + 1, :]                          # f32 (TILE_N, Dp)
        y = jnp.dot(diff.astype(jnp.bfloat16), linvT[c],
                    preferred_element_type=jnp.float32)        # (TILE_N, Dp) f32
        m_c = jnp.sum(y * y, axis=1, keepdims=True)            # (TILE_N, 1) f32
        total_vec = total_vec + m_c
        label_vec = label_vec + jnp.where(lab == c, m_c, 0.0)

    total_sum = jnp.sum(total_vec * valid)
    label_sum = jnp.sum(label_vec * valid)

    # Lane-dense (8, 128) partial slab: [0,0] = label_sum, [0,1] = total_sum.
    rows = jax.lax.broadcasted_iota(jnp.int32, (8, 128), 0)
    cols = jax.lax.broadcasted_iota(jnp.int32, (8, 128), 1)
    slab = jnp.where((rows == 0) & (cols == 0), label_sum,
                     jnp.where((rows == 0) & (cols == 1), total_sum, 0.0))
    out_ref[0] = slab


def feature_distribution_consistency(features, labels, mu, sigma, *, tile_n=128):
    """features: (N, D) f32, labels: (N,) i32, mu: (C, D) f32, sigma: (C, D, D) f32."""
    N, D = features.shape
    C = mu.shape[0]
    # Repulsion term divides by (C - 1); C == 1 is undefined (same as PyTorch ref).
    assert C > 1, "FeatureDistributionConsistency requires at least 2 classes"

    # --- parameter glue (matches torch._batch_mahalanobis numerics) ---
    # TODO(synk): Cholesky factorization / triangular solve have no clean Pallas
    # TPU equivalent; computed in plain JAX, kernel consumes L^{-T} directly.
    L = jnp.linalg.cholesky(sigma.astype(jnp.float32))                    # (C, D, D)
    eye = jnp.eye(D, dtype=jnp.float32)
    Linv = jax.vmap(
        lambda Lc: jax.scipy.linalg.solve_triangular(Lc, eye, lower=True))(L)
    LinvT = jnp.swapaxes(Linv, -1, -2)                                    # L^{-T}

    # --- pad to MXU / lane friendly shapes ---
    Dp = pl.cdiv(D, 128) * 128
    Np = pl.cdiv(N, tile_n) * tile_n
    num_tiles = Np // tile_n

    feats_p = jnp.zeros((Np, Dp), jnp.float32).at[:N, :D].set(
        features.astype(jnp.float32))
    mu_p = jnp.zeros((C, Dp), jnp.float32).at[:, :D].set(mu.astype(jnp.float32))
    linvT_p = jnp.zeros((C, Dp, Dp), jnp.bfloat16).at[:, :D, :D].set(
        LinvT.astype(jnp.bfloat16))
    labels_p = jnp.full((Np, 1), -1, jnp.int32).at[:N, 0].set(
        labels.astype(jnp.int32))

    kernel = functools.partial(_fdc_kernel, n_valid=N, num_classes=C)

    flops = 2 * C * Np * Dp * Dp
    bytes_accessed = (Np * Dp * 4 + C * Dp * 4 + C * Dp * Dp * 2
                      + Np * 4 + num_tiles * 8 * 128 * 4)

    partials = pl.pallas_call(
        kernel,
        out_shape=jax.ShapeDtypeStruct((num_tiles, 8, 128), jnp.float32),
        grid=(num_tiles,),
        in_specs=[
            pl.BlockSpec((tile_n, Dp), lambda i: (i, 0)),       # features (tiled)
            pl.BlockSpec((tile_n, 1), lambda i: (i, 0)),        # labels   (tiled)
            pl.BlockSpec((C, Dp), lambda i: (0, 0)),            # mu       (resident)
            pl.BlockSpec((C, Dp, Dp), lambda i: (0, 0, 0)),     # L^{-T}   (resident)
        ],
        out_specs=pl.BlockSpec((1, 8, 128), lambda i: (i, 0, 0)),
        compiler_params=pltpu.CompilerParams(
            dimension_semantics=("parallel",)),
        cost_estimate=pl.CostEstimate(
            flops=flops, transcendentals=0, bytes_accessed=bytes_accessed),
    )(feats_p, labels_p, mu_p, linvT_p)

    label_sum = jnp.sum(partials[:, 0, 0])
    total_sum = jnp.sum(partials[:, 0, 1])
    attraction = label_sum / N
    repulsion = (total_sum - label_sum) / (N * (C - 1))
    return repulsion - attraction


def _reference(features, labels, mu, sigma):
    """Pure-JAX f32 reference mirroring the PyTorch forward (Cholesky path)."""
    C, D = mu.shape
    N = features.shape[0]
    L = jnp.linalg.cholesky(sigma)
    eye = jnp.eye(D, dtype=jnp.float32)
    Linv = jax.vmap(
        lambda Lc: jax.scipy.linalg.solve_triangular(Lc, eye, lower=True))(L)
    diff = features[None, :, :] - mu[:, None, :]                   # (C, N, D)
    y = jnp.einsum("cnd,ced->cne", diff, Linv)                     # L^{-1} diff
    M = jnp.sum(y * y, axis=-1)                                    # (C, N)
    onehot = (jnp.arange(C)[:, None] == labels[None, :]).astype(jnp.float32)
    attraction = jnp.sum(M * onehot) / N
    repulsion = jnp.sum(M * (1.0 - onehot)) / (N * (C - 1))
    return repulsion - attraction


if __name__ == "__main__":
    key = jax.random.PRNGKey(0)
    k_feat, k_lab, k_mu, k_sig = jax.random.split(key, 4)

    N, D, C = 200, 32, 4   # 2 grid tiles of 128 (exercises padding + masking)

    features = jax.random.normal(k_feat, (N, D), dtype=jnp.float32)
    labels = jax.random.randint(k_lab, (N,), 0, C, dtype=jnp.int32)

    # Deterministic "module parameters": class means and SPD covariances.
    mu = jax.random.normal(k_mu, (C, D), dtype=jnp.float32)
    A = 0.1 * jax.random.normal(k_sig, (C, D, D), dtype=jnp.float32)
    sigma = jnp.einsum("cij,ckj->cik", A, A) + jnp.eye(D, dtype=jnp.float32)[None]

    result = feature_distribution_consistency(features, labels, mu, sigma)
    result = jax.block_until_ready(result)

    ref = _reference(features, labels, mu, sigma)
    # Tolerance absorbs the bf16 MXU operands (accumulation is f32).
    assert jnp.allclose(result, ref, rtol=3e-2, atol=0.3), (result, ref)

    print("KERNEL_OK")
</pallas_src>

<mosaic_0001>
module attributes {stable_mosaic.version = 11 : i64} {
  func.func @_fdc_kernel(%arg0: i32, %arg1: memref<128x128xf32, #tpu.memory_space<vmem>>, %arg2: memref<128x1xi32, #tpu.memory_space<vmem>>, %arg3: memref<4x128xf32, #tpu.memory_space<vmem>>, %arg4: memref<4x128x128xbf16, #tpu.memory_space<vmem>>, %arg5: memref<1x8x128xf32, #tpu.memory_space<vmem>>) attributes {dimension_semantics = [#tpu.dimension_semantics<parallel>], iteration_bounds = array<i64: 2>, scalar_prefetch = 0 : i64, scratch_operands = 0 : i64, tpu.core_type = #tpu.core_type<tc>, window_params = [{transform_indices = @transform_0, window_bounds = array<i64: 128, 128>}, {transform_indices = @transform_1, window_bounds = array<i64: 128, 1>}, {pipeline_mode = #tpu.pipeline_mode<synchronous>, transform_indices = @transform_2, window_bounds = array<i64: 4, 128>}, {pipeline_mode = #tpu.pipeline_mode<synchronous>, transform_indices = @transform_3, window_bounds = array<i64: 4, 128, 128>}, {transform_indices = @transform_4, window_bounds = array<i64: 1, 8, 128>}]} {
    %c0 = arith.constant 0 : index
    %c0_0 = arith.constant 0 : index
    %0 = vector.load %arg1[%c0, %c0_0] : memref<128x128xf32, #tpu.memory_space<vmem>>, vector<128x128xf32>
    %c0_1 = arith.constant 0 : index
    %c0_2 = arith.constant 0 : index
    %1 = vector.load %arg2[%c0_1, %c0_2] : memref<128x1xi32, #tpu.memory_space<vmem>>, vector<128x1xi32>
    %c0_3 = arith.constant 0 : index
    %c0_4 = arith.constant 0 : index
    %2 = vector.load %arg3[%c0_3, %c0_4] : memref<4x128xf32, #tpu.memory_space<vmem>>, vector<4x128xf32>
    %c0_5 = arith.constant 0 : index
    %c0_6 = arith.constant 0 : index
    %c0_7 = arith.constant 0 : index
    %3 = vector.load %arg4[%c0_5, %c0_6, %c0_7] : memref<4x128x128xbf16, #tpu.memory_space<vmem>>, vector<4x128x128xbf16>
    %c128_i32 = arith.constant 128 : i32
    %4 = arith.muli %arg0, %c128_i32 : i32
    %5 = tpu.iota {dimensions = array<i32: 0>} : vector<128x1xi32>
    %6 = vector.broadcast %4 : i32 to vector<128x1xi32>
    %7 = arith.addi %6, %5 : vector<128x1xi32>
    %c200_i32 = arith.constant 200 : i32
    %8 = vector.broadcast %c200_i32 : i32 to vector<128x1xi32>
    %9 = arith.cmpi slt, %7, %8 : vector<128x1xi32>
    %10 = arith.extui %9 : vector<128x1xi1> to vector<128x1xi32>
    %11 = arith.sitofp %10 : vector<128x1xi32> to vector<128x1xf32>
    %cst = arith.constant 0.000000e+00 : f32
    %12 = vector.broadcast %cst : f32 to vector<128x1xf32>
    %cst_8 = arith.constant 0.000000e+00 : f32
    %13 = vector.broadcast %cst_8 : f32 to vector<128x1xf32>
    %14 = vector.extract_strided_slice %2 {offsets = [0, 0], sizes = [1, 128], strides = [1, 1]} : vector<4x128xf32> to vector<1x128xf32>
    %15 = vector.broadcast %14 : vector<1x128xf32> to vector<128x128xf32>
    %16 = arith.subf %0, %15 : vector<128x128xf32>
    %17 = arith.truncf %16 : vector<128x128xf32> to vector<128x128xbf16>
    %18 = vector.extract_strided_slice %3 {offsets = [0, 0, 0], sizes = [1, 128, 128], strides = [1, 1, 1]} : vector<4x128x128xbf16> to vector<1x128x128xbf16>
    %19 = vector.shape_cast %18 : vector<1x128x128xbf16> to vector<128x128xbf16>
    %cst_9 = arith.constant dense<0.000000e+00> : vector<128x128xf32>
    %20 = tpu.matmul %17, %19, %cst_9 {dimension_numbers = #tpu.dot_dimension_numbers<[1], [0], [0], [1], [0, 0, 1, 1], [], []>} : vector<128x128xbf16>, vector<128x128xbf16>, vector<128x128xf32> -> vector<128x128xf32>
    %21 = arith.mulf %20, %20 : vector<128x128xf32>
    %cst_10 = arith.constant dense<0.000000e+00> : vector<128xf32>
    %22 = vector.multi_reduction <add>, %21, %cst_10 [1] : vector<128x128xf32> to vector<128xf32>
    %23 = vector.shape_cast %22 : vector<128xf32> to vector<128x1xf32>
    %24 = arith.addf %12, %23 : vector<128x1xf32>
    %c0_i32 = arith.constant 0 : i32
    %25 = vector.broadcast %c0_i32 : i32 to vector<128x1xi32>
    %26 = arith.cmpi eq, %1, %25 : vector<128x1xi32>
    %cst_11 = arith.constant 0.000000e+00 : f32
    %27 = vector.broadcast %cst_11 : f32 to vector<128x1xf32>
    %28 = arith.select %26, %23, %27 : vector<128x1xi1>, vector<128x1xf32>
    %29 = arith.addf %13, %28 : vector<128x1xf32>
    %30 = vector.extract_strided_slice %2 {offsets = [1, 0], sizes = [1, 128], strides = [1, 1]} : vector<4x128xf32> to vector<1x128xf32>
    %31 = vector.broadcast %30 : vector<1x128xf32> to vector<128x128xf32>
    %32 = arith.subf %0, %31 : vector<128x128xf32>
    %33 = arith.truncf %32 : vector<128x128xf32> to vector<128x128xbf16>
    %34 = vector.extract_strided_slice %3 {offsets = [1, 0, 0], sizes = [1, 128, 128], strides = [1, 1, 1]} : vector<4x128x128xbf16> to vector<1x128x128xbf16>
    %35 = vector.shape_cast %34 : vector<1x128x128xbf16> to vector<128x128xbf16>
    %cst_12 = arith.constant dense<0.000000e+00> : vector<128x128xf32>
    %36 = tpu.matmul %33, %35, %cst_12 {dimension_numbers = #tpu.dot_dimension_numbers<[1], [0], [0], [1], [0, 0, 1, 1], [], []>} : vector<128x128xbf16>, vector<128x128xbf16>, vector<128x128xf32> -> vector<128x128xf32>
    %37 = arith.mulf %36, %36 : vector<128x128xf32>
    %cst_13 = arith.constant dense<0.000000e+00> : vector<128xf32>
    %38 = vector.multi_reduction <add>, %37, %cst_13 [1] : vector<128x128xf32> to vector<128xf32>
    %39 = vector.shape_cast %38 : vector<128xf32> to vector<128x1xf32>
    %40 = arith.addf %24, %39 : vector<128x1xf32>
    %c1_i32 = arith.constant 1 : i32
    %41 = vector.broadcast %c1_i32 : i32 to vector<128x1xi32>
    %42 = arith.cmpi eq, %1, %41 : vector<128x1xi32>
    %cst_14 = arith.constant 0.000000e+00 : f32
    %43 = vector.broadcast %cst_14 : f32 to vector<128x1xf32>
    %44 = arith.select %42, %39, %43 : vector<128x1xi1>, vector<128x1xf32>
    %45 = arith.addf %29, %44 : vector<128x1xf32>
    %46 = vector.extract_strided_slice %2 {offsets = [2, 0], sizes = [1, 128], strides = [1, 1]} : vector<4x128xf32> to vector<1x128xf32>
    %47 = vector.broadcast %46 : vector<1x128xf32> to vector<128x128xf32>
    %48 = arith.subf %0, %47 : vector<128x128xf32>
    %49 = arith.truncf %48 : vector<128x128xf32> to vector<128x128xbf16>
    %50 = vector.extract_strided_slice %3 {offsets = [2, 0, 0], sizes = [1, 128, 128], strides = [1, 1, 1]} : vector<4x128x128xbf16> to vector<1x128x128xbf16>
    %51 = vector.shape_cast %50 : vector<1x128x128xbf16> to vector<128x128xbf16>
    %cst_15 = arith.constant dense<0.000000e+00> : vector<128x128xf32>
    %52 = tpu.matmul %49, %51, %cst_15 {dimension_numbers = #tpu.dot_dimension_numbers<[1], [0], [0], [1], [0, 0, 1, 1], [], []>} : vector<128x128xbf16>, vector<128x128xbf16>, vector<128x128xf32> -> vector<128x128xf32>
    %53 = arith.mulf %52, %52 : vector<128x128xf32>
    %cst_16 = arith.constant dense<0.000000e+00> : vector<128xf32>
    %54 = vector.multi_reduction <add>, %53, %cst_16 [1] : vector<128x128xf32> to vector<128xf32>
    %55 = vector.shape_cast %54 : vector<128xf32> to vector<128x1xf32>
    %56 = arith.addf %40, %55 : vector<128x1xf32>
    %c2_i32 = arith.constant 2 : i32
    %57 = vector.broadcast %c2_i32 : i32 to vector<128x1xi32>
    %58 = arith.cmpi eq, %1, %57 : vector<128x1xi32>
    %cst_17 = arith.constant 0.000000e+00 : f32
    %59 = vector.broadcast %cst_17 : f32 to vector<128x1xf32>
    %60 = arith.select %58, %55, %59 : vector<128x1xi1>, vector<128x1xf32>
    %61 = arith.addf %45, %60 : vector<128x1xf32>
    %62 = vector.extract_strided_slice %2 {offsets = [3, 0], sizes = [1, 128], strides = [1, 1]} : vector<4x128xf32> to vector<1x128xf32>
    %63 = vector.broadcast %62 : vector<1x128xf32> to vector<128x128xf32>
    %64 = arith.subf %0, %63 : vector<128x128xf32>
    %65 = arith.truncf %64 : vector<128x128xf32> to vector<128x128xbf16>
    %66 = vector.extract_strided_slice %3 {offsets = [3, 0, 0], sizes = [1, 128, 128], strides = [1, 1, 1]} : vector<4x128x128xbf16> to vector<1x128x128xbf16>
    %67 = vector.shape_cast %66 : vector<1x128x128xbf16> to vector<128x128xbf16>
    %cst_18 = arith.constant dense<0.000000e+00> : vector<128x128xf32>
    %68 = tpu.matmul %65, %67, %cst_18 {dimension_numbers = #tpu.dot_dimension_numbers<[1], [0], [0], [1], [0, 0, 1, 1], [], []>} : vector<128x128xbf16>, vector<128x128xbf16>, vector<128x128xf32> -> vector<128x128xf32>
    %69 = arith.mulf %68, %68 : vector<128x128xf32>
    %cst_19 = arith.constant dense<0.000000e+00> : vector<128xf32>
    %70 = vector.multi_reduction <add>, %69, %cst_19 [1] : vector<128x128xf32> to vector<128xf32>
    %71 = vector.shape_cast %70 : vector<128xf32> to vector<128x1xf32>
    %72 = arith.addf %56, %71 : vector<128x1xf32>
    %c3_i32 = arith.constant 3 : i32
    %73 = vector.broadcast %c3_i32 : i32 to vector<128x1xi32>
    %74 = arith.cmpi eq, %1, %73 : vector<128x1xi32>
    %cst_20 = arith.constant 0.000000e+00 : f32
    %75 = vector.broadcast %cst_20 : f32 to vector<128x1xf32>
    %76 = arith.select %74, %71, %75 : vector<128x1xi1>, vector<128x1xf32>
    %77 = arith.addf %61, %76 : vector<128x1xf32>
    %78 = arith.mulf %72, %11 : vector<128x1xf32>
    %79 = vector.shape_cast %78 : vector<128x1xf32> to vector<1x128x1xf32>
    %cst_21 = arith.constant dense<0.000000e+00> : vector<1xf32>
    %80 = vector.multi_reduction <add>, %79, %cst_21 [1, 2] : vector<1x128x1xf32> to vector<1xf32>
    %81 = vector.shape_cast %80 : vector<1xf32> to vector<1x1x1xf32>
    %82 = vector.extract %81[0, 0, 0] : f32 from vector<1x1x1xf32>
    %83 = arith.mulf %77, %11 : vector<128x1xf32>
    %84 = vector.shape_cast %83 : vector<128x1xf32> to vector<1x128x1xf32>
    %cst_22 = arith.constant dense<0.000000e+00> : vector<1xf32>
    %85 = vector.multi_reduction <add>, %84, %cst_22 [1, 2] : vector<1x128x1xf32> to vector<1xf32>
    %86 = vector.shape_cast %85 : vector<1xf32> to vector<1x1x1xf32>
    %87 = vector.extract %86[0, 0, 0] : f32 from vector<1x1x1xf32>
    %88 = tpu.iota {dimensions = array<i32: 0>} : vector<8x128xi32>
    %89 = tpu.iota {dimensions = array<i32: 1>} : vector<8x128xi32>
    %c0_i32_23 = arith.constant 0 : i32
    %90 = vector.broadcast %c0_i32_23 : i32 to vector<8x128xi32>
    %91 = arith.cmpi eq, %88, %90 : vector<8x128xi32>
    %c0_i32_24 = arith.constant 0 : i32
    %92 = vector.broadcast %c0_i32_24 : i32 to vector<8x128xi32>
    %93 = arith.cmpi eq, %89, %92 : vector<8x128xi32>
    %94 = arith.andi %91, %93 : vector<8x128xi1>
    %c0_i32_25 = arith.constant 0 : i32
    %95 = vector.broadcast %c0_i32_25 : i32 to vector<8x128xi32>
    %96 = arith.cmpi eq, %88, %95 : vector<8x128xi32>
    %c1_i32_26 = arith.constant 1 : i32
    %97 = vector.broadcast %c1_i32_26 : i32 to vector<8x128xi32>
    %98 = arith.cmpi eq, %89, %97 : vector<8x128xi32>
    %99 = arith.andi %96, %98 : vector<8x128xi1>
    %cst_27 = arith.constant 0.000000e+00 : f32
    %100 = vector.broadcast %82 : f32 to vector<8x128xf32>
    %101 = vector.broadcast %cst_27 : f32 to vector<8x128xf32>
    %102 = arith.select %99, %100, %101 : vector<8x128xi1>, vector<8x128xf32>
    %103 = vector.broadcast %87 : f32 to vector<8x128xf32>
    %104 = arith.select %94, %103, %102 : vector<8x128xi1>, vector<8x128xf32>
    %c0_28 = arith.constant 0 : index
    %c0_29 = arith.constant 0 : index
    %c0_30 = arith.constant 0 : index
    %105 = vector.load %arg5[%c0_28, %c0_29, %c0_30] : memref<1x8x128xf32, #tpu.memory_space<vmem>>, vector<1x8x128xf32>
    %106 = vector.shape_cast %105 : vector<1x8x128xf32> to vector<8x128xf32>
    %107 = vector.shape_cast %104 : vector<8x128xf32> to vector<1x8x128xf32>
    tpu.vector_store %arg5[%c0_28, %c0_29, %c0_30], %107 {strides = array<i32>} : memref<1x8x128xf32, #tpu.memory_space<vmem>>, vector<1x8x128xf32>,
    return
  }
  func.func @transform_0(%arg0: i32) -> (i32, i32) {
    %c0_i32 = arith.constant 0 : i32
    %c0_i32_0 = arith.constant 0 : i32
    return %arg0, %c0_i32 : i32, i32
  }
  func.func @transform_1(%arg0: i32) -> (i32, i32) {
    %c0_i32 = arith.constant 0 : i32
    %c0_i32_0 = arith.constant 0 : i32
    return %arg0, %c0_i32 : i32, i32
  }
  func.func @transform_2(%arg0: i32) -> (i32, i32) {
    %c0_i32 = arith.constant 0 : i32
    %c0_i32_0 = arith.constant 0 : i32
    %c0_i32_1 = arith.constant 0 : i32
    return %c0_i32, %c0_i32_0 : i32, i32
  }
  func.func @transform_3(%arg0: i32) -> (i32, i32, i32) {
    %c0_i32 = arith.constant 0 : i32
    %c0_i32_0 = arith.constant 0 : i32
    %c0_i32_1 = arith.constant 0 : i32
    %c0_i32_2 = arith.constant 0 : i32
    return %c0_i32, %c0_i32_0, %c0_i32_1 : i32, i32, i32
  }
  func.func @transform_4(%arg0: i32) -> (i32, i32, i32) {
    %c0_i32 = arith.constant 0 : i32
    %c0_i32_0 = arith.constant 0 : i32
    %c0_i32_1 = arith.constant 0 : i32
    return %arg0, %c0_i32, %c0_i32_0 : i32, i32, i32
  }
}

</mosaic_0001>

<llo_original>
// kernel: tpu_custom_call.1
$region0: #{tpu_custom_call.1}
  #allocation0 [shape = 'u32[]', space=smem, size = 0x4, offset = 0x4, fixed_abs, tag = 'smem constant byte address 0x4 - core index']
  #allocation1 [shape = 'u32[72,128]{1,0:T(1,128)}', space=vmem, size = 0x9000, scoped, tag = 'internal scratch']
  %s0 = inlined_call_operand.vmem [shape: f32[256,128], index: 0, kind: input, shape index: {}]
  %s1 = inlined_call_operand.vmem [shape: s32[256,1], index: 1, kind: input, shape index: {}]
  %s2 = inlined_call_operand.hbm [shape: f32[4,128], index: 2, kind: input, shape index: {}]
  %s3 = inlined_call_operand.hbm [shape: bf16[4,128,128], index: 3, kind: input, shape index: {}]
  %s4 = inlined_call_operand.hbm [shape: f32[2,8,128], index: 4, kind: output, shape index: {}]
  %s5 = sld [smem:[#allocation0]]
  $region57: #{tpu_custom_call.1} parent=0
    _
  %s7 = ssub.s32 1, %s5
  %s8 = scalar_select 0, %s7, %s5
  $region1: #{tpu_custom_call.1} parent=0
    #allocation2 [shape = 'u8[2048]{0}', space=vmem, size = 0x800, scoped, tag = 'input window, operand 2, single buffered']
    #allocation3 [shape = 's32[2]{0}', space=sflag, size = 0x8, scoped, tag = 'scoped memory for tpu_custom_call.1']
    #allocation4 [shape = 's32[2]{0}', space=sflag, size = 0x8, scoped, tag = 'scoped memory for tpu_custom_call.1']
    #allocation5 [shape = 'u8[131072]{0}', space=vmem, size = 0x20000, scoped, tag = 'input window, operand 3, single buffered']
    #allocation6 [shape = 's32[1]{0}', space=sflag, size = 0x4, scoped, tag = 'scoped memory for tpu_custom_call.1']
    #allocation7 [shape = 'u8[8192]{0}', space=vmem, size = 0x2000, scoped, tag = 'output window, operand 0']
    %9 = vsyncpa [#allocation3], 0
    %10 = vsyncpa [#allocation6], 0
    %11 = vsyncpa [#allocation4], 0
    %s12 = scalar_lea.sflag [#allocation4], 1
    %13 = vsyncpa %s12, 0
    loop: start=0, step=1, limit=4
    $region2: #{tpu_custom_call.1} parent=1 // loop_pre_header
      _
    $region3: #{tpu_custom_call.1} parent=1 // loop_header
      %s15 = sphi 0, %s19
      %p16 = scmp.ge.s32.totalorder %s15, 4
      %s25 = sphi 0, %s27
      %s28 = sphi 0, %s25
      %s29 = sphi 0, %s28
      %s45 = sphi 0, %s29
      %s51 = sphi 0, %s53
      %s54 = sphi 0, %s51
      %s55 = sphi 0, %s54
      %s71 = sphi 0, %s55
      %s75 = sphi 0, %s75
      %s77 = sphi 0, %s75
      %s78 = sphi 0, %s77
      %s92 = sphi 0, %s78
      %s96 = sphi 0, %s96
      %s98 = sphi 0, %s96
      %s99 = sphi 0, %s98
      %s113 = sphi 0, %s99
      %s119 = sphi 0, %s121
      %s122 = sphi 0, %s119
      %s123 = sphi 0, %s122
      %s139 = sphi 0, %s123
    $region4: #{tpu_custom_call.1} parent=1 // loop_header_branch
      %18 = sbr.rel (%p16) target = $region8
    $region5: #{tpu_custom_call.1} parent=1 // loop_body
      %s20 = ssub.s32 %s15, 1
      %s21 = ssub.s32 %s15, 2
      %s22 = sadd.s32 %s15, 1
      %s23 = ssub.s32 %s15, %s22
      %p24 = scmp.eq.s32.totalorder %s23, 0
      %s26 = sadd.s32 %s25, 1
      %s27 = scalar_select %p24, %s25, %s26
      %p30 = pneg %p24
      %p31 = scmp.eq.s32.totalorder %s15, 1
      %p32 = por %p30, %p31
      %p33 = scmp.ne.s32.totalorder %s25, %s28
      %p34 = scmp.eq.s32.totalorder %s15, 0
      %p35 = por %p33, %p34
      %p36 = scmp.ne.s32.totalorder %s25, %s28
      %p37 = scmp.eq.s32.totalorder %s20, 1
      %p38 = por %p36, %p37
      %p39 = scmp.ne.s32.totalorder %s28, %s29
      %p40 = scmp.eq.s32.totalorder %s20, 0
      %p41 = por %p39, %p40
      %p42 = scmp.ne.s32.totalorder %s28, %s29
      %p43 = scmp.eq.s32.totalorder %s21, 1
      %p44 = por %p42, %p43
      %p46 = scmp.ne.s32.totalorder %s29, %s45
      %p47 = scmp.eq.s32.totalorder %s21, 0
      %p48 = por %p46, %p47
      %s49 = ssub.s32 %s15, %s22
      %p50 = scmp.eq.s32.totalorder %s49, 0
      %s52 = sadd.s32 %s51, 1
      %s53 = scalar_select %p50, %s51, %s52
      %p56 = pneg %p50
      %p57 = scmp.eq.s32.totalorder %s15, 1
      %p58 = por %p56, %p57
      %p59 = scmp.ne.s32.totalorder %s51, %s54
      %p60 = scmp.eq.s32.totalorder %s15, 0
      %p61 = por %p59, %p60
      %p62 = scmp.ne.s32.totalorder %s51, %s54
      %p63 = scmp.eq.s32.totalorder %s20, 1
      %p64 = por %p62, %p63
      %p65 = scmp.ne.s32.totalorder %s54, %s55
      %p66 = scmp.eq.s32.totalorder %s20, 0
      %p67 = por %p65, %p66
      %p68 = scmp.ne.s32.totalorder %s54, %s55
      %p69 = scmp.eq.s32.totalorder %s21, 1
      %p70 = por %p68, %p69
      %p72 = scmp.ne.s32.totalorder %s55, %s71
      %p73 = scmp.eq.s32.totalorder %s21, 0
      %p74 = por %p72, %p73
      %s76 = sadd.s32 %s75, 1
      %p79 = scmp.eq.s32.totalorder %s15, 1
      %p80 = scmp.ne.s32.totalorder %s75, %s77
      %p81 = scmp.eq.s32.totalorder %s15, 0
      %p82 = por %p80, %p81
      %p83 = scmp.ne.s32.totalorder %s75, %s77
      %p84 = scmp.eq.s32.totalorder %s20, 1
      %p85 = por %p83, %p84
      %p86 = scmp.ne.s32.totalorder %s77, %s78
      %p87 = scmp.eq.s32.totalorder %s20, 0
      %p88 = por %p86, %p87
      %p89 = scmp.ne.s32.totalorder %s77, %s78
      %p90 = scmp.eq.s32.totalorder %s21, 1
      %p91 = por %p89, %p90
      %p93 = scmp.ne.s32.totalorder %s78, %s92
      %p94 = scmp.eq.s32.totalorder %s21, 0
      %p95 = por %p93, %p94
      %s97 = sadd.s32 %s96, 1
      %p100 = scmp.eq.s32.totalorder %s15, 1
      %p101 = scmp.ne.s32.totalorder %s96, %s98
      %p102 = scmp.eq.s32.totalorder %s15, 0
      %p103 = por %p101, %p102
      %p104 = scmp.ne.s32.totalorder %s96, %s98
      %p105 = scmp.eq.s32.totalorder %s20, 1
      %p106 = por %p104, %p105
      %p107 = scmp.ne.s32.totalorder %s98, %s99
      %p108 = scmp.eq.s32.totalorder %s20, 0
      %p109 = por %p107, %p108
      %p110 = scmp.ne.s32.totalorder %s98, %s99
      %p111 = scmp.eq.s32.totalorder %s21, 1
      %p112 = por %p110, %p111
      %p114 = scmp.ne.s32.totalorder %s99, %s113
      %p115 = scmp.eq.s32.totalorder %s21, 0
      %p116 = por %p114, %p115
      %s117 = ssub.s32 %s15, %s22
      %p118 = scmp.eq.s32.totalorder %s117, 0
      %s120 = sadd.s32 %s119, 1
      %s121 = scalar_select %p118, %s119, %s120
      %p124 = pneg %p118
      %p125 = scmp.eq.s32.totalorder %s15, 1
      %p126 = por %p124, %p125
      %p127 = scmp.ne.s32.totalorder %s119, %s122
      %p128 = scmp.eq.s32.totalorder %s15, 0
      %p129 = por %p127, %p128
      %p130 = scmp.ne.s32.totalorder %s119, %s122
      %p131 = scmp.eq.s32.totalorder %s20, 1
      %p132 = por %p130, %p131
      %p133 = scmp.ne.s32.totalorder %s122, %s123
      %p134 = scmp.eq.s32.totalorder %s20, 0
      %p135 = por %p133, %p134
      %p136 = scmp.ne.s32.totalorder %s122, %s123
      %p137 = scmp.eq.s32.totalorder %s21, 1
      %p138 = por %p136, %p137
      %p140 = scmp.ne.s32.totalorder %s123, %s139
      %p141 = scmp.eq.s32.totalorder %s21, 0
      %p142 = por %p140, %p141
      %p143 = scmp.le.s32.totalorder 1, %s15
      %p144 = scmp.lt.s32.totalorder %s15, 3
      %p145 = pnand %p143, %p144
      %p146 = pneg %p145
      // Predicated region
      $region9: #{tpu_custom_call.1} parent=5 // pred_check
        _
      $region10: #{tpu_custom_call.1} parent=5 // pred_check_branch
        %148 = sbr.rel (%p145) target = $region12
      $region11: #{tpu_custom_call.1} parent=5 // pred_region
        %s149 = ssub.s32 %s15, 1
        // Predicated region
        $region13: #{tpu_custom_call.1} parent=11 // pred_check
          %p150 = pneg %p88
        $region14: #{tpu_custom_call.1} parent=11 // pred_check_branch
          %152 = sbr.rel (%p150) target = $region16
        $region15: #{tpu_custom_call.1} parent=11 // pred_region
          %154 = vsyncadd [#allocation3], 0
          %s156 = sshll.u32 %s2, 4
          %s157 = int_to_ptr.hbm [resolvable:$true] %s156
          %s158 = sshll.u32 [#allocation2], 4
          %s159 = int_to_ptr.vmem [resolvable:$true] %s158
          %161 = dma.hbm_to_vmem [thread:$0]  %s157, 64, %s159, [#allocation3]
        $region16: #{tpu_custom_call.1} parent=11 // pred_fallthru
          _
        // Predicated region
        $region17: #{tpu_custom_call.1} parent=11 // pred_check
          %p162 = pneg %p109
        $region18: #{tpu_custom_call.1} parent=11 // pred_check_branch
          %164 = sbr.rel (%p162) target = $region20
        $region19: #{tpu_custom_call.1} parent=11 // pred_region
          %166 = vsyncadd [#allocation6], 0
          %s167 = sshll.u32 %s3, 4
          %s168 = int_to_ptr.hbm [resolvable:$true] %s167
          %s169 = sshll.u32 [#allocation5], 4
          %s170 = int_to_ptr.vmem [resolvable:$true] %s169
          %175 = dma.hbm_to_vmem [thread:$0]  %s168, 4096, %s170, [#allocation6], 64, 64, 4
        $region20: #{tpu_custom_call.1} parent=11 // pred_fallthru
          _
      $region12: #{tpu_custom_call.1} parent=5 // pred_fallthru
        _
      %p176 = scmp.lt.s32.totalorder %s15, 2
      // Predicated region
      $region21: #{tpu_custom_call.1} parent=5 // pred_check
        %p177 = pneg %p176
      $region22: #{tpu_custom_call.1} parent=5 // pred_check_branch
        %179 = sbr.rel (%p177) target = $region24
      $region23: #{tpu_custom_call.1} parent=5 // pred_region
        // Predicated region
        $region25: #{tpu_custom_call.1} parent=23 // pred_check
          %p180 = pneg %p35
        $region26: #{tpu_custom_call.1} parent=23 // pred_check_branch
          %182 = sbr.rel (%p180) target = $region28
        $region27: #{tpu_custom_call.1} parent=23 // pred_region
          %s183 = smul.u32 16, %s15
          %p184 = scmp.lt.s32.totalorder %s183, 31
          %s185 = scalar_select %p184, %s183, 31
          %s186 = smul.addr %s185, 8
          %s187 = scalar_lea.vmem %s0, %s186
          %s188 = smul.u32 16, %s15
        $region28: #{tpu_custom_call.1} parent=23 // pred_fallthru
          _
        // Predicated region
        $region29: #{tpu_custom_call.1} parent=23 // pred_check
          %p189 = pneg %p61
        $region30: #{tpu_custom_call.1} parent=23 // pred_check_branch
          %191 = sbr.rel (%p189) target = $region32
        $region31: #{tpu_custom_call.1} parent=23 // pred_region
          %s192 = smul.u32 16, %s15
          %p193 = scmp.lt.s32.totalorder %s192, 31
          %s194 = scalar_select %p193, %s192, 31
          %s195 = smul.addr %s194, 8
          %s196 = scalar_lea.vmem %s1, %s195
          %s197 = smul.u32 16, %s15
        $region32: #{tpu_custom_call.1} parent=23 // pred_fallthru
          _
      $region24: #{tpu_custom_call.1} parent=5 // pred_fallthru
        _
      %p198 = scmp.le.s32.totalorder 1, %s15
      %p199 = scmp.lt.s32.totalorder %s15, 3
      %p200 = pnand %p198, %p199
      %p201 = pneg %p200
      // Predicated region
      $region33: #{tpu_custom_call.1} parent=5 // pred_check
        _
      $region34: #{tpu_custom_call.1} parent=5 // pred_check_branch
        %203 = sbr.rel (%p200) target = $region36
      $region35: #{tpu_custom_call.1} parent=5 // pred_region
        %s204 = ssub.s32 %s15, 1
        // Predicated region
        $region37: #{tpu_custom_call.1} parent=35 // pred_check
          %p205 = pneg %p88
        $region38: #{tpu_custom_call.1} parent=35 // pred_check_branch
          %207 = sbr.rel (%p205) target = $region40
        $region39: #{tpu_custom_call.1} parent=35 // pred_region
          %209 = dma.done [#allocation3], 64
        $region40: #{tpu_custom_call.1} parent=35 // pred_fallthru
          _
        // Predicated region
        $region41: #{tpu_custom_call.1} parent=35 // pred_check
          %p210 = pneg %p109
        $region42: #{tpu_custom_call.1} parent=35 // pred_check_branch
          %212 = sbr.rel (%p210) target = $region44
        $region43: #{tpu_custom_call.1} parent=35 // pred_region
          %214 = dma.done [#allocation6], 4096
        $region44: #{tpu_custom_call.1} parent=35 // pred_fallthru
          _
        %s215 = smul.u32 16, %s20
        %p216 = scmp.lt.s32.totalorder %s215, 31
        %s217 = scalar_select %p216, %s215, 31
        %s218 = smul.addr %s217, 8
        %s219 = scalar_lea.vmem %s0, %s218
        %p220 = pneg %p41
        %p221 = pneg %p38
        %s222 = smul.u32 16, %s20
        %p223 = scmp.lt.s32.totalorder %s222, 31
        %s224 = scalar_select %p223, %s222, 31
        %s225 = smul.addr %s224, 8
        %s226 = scalar_lea.vmem %s1, %s225
        %p227 = pneg %p67
        %p228 = pneg %p64
        %p229 = pneg %p88
        %p230 = pneg %p85
        %p231 = pneg %p109
        %p232 = pneg %p106
        %p233 = pneg %p135
        %p234 = pneg %p132
        %s235 = sand.u32 %s122, 1
        %s236 = scalar_lea.sflag [#allocation4], %s235
        %s237 = sand.u32 %s122, 1
        %s238 = smul.addr %s237, 8
        %s239 = scalar_lea.vmem [#allocation7], %s238
        %s240 = smul.u32 16, %s20
        %p241 = scmp.lt.s32.totalorder %s240, 31
        %s242 = scalar_select %p241, %s240, 31
        %s243 = smul.addr %s242, 8
        %s244 = scalar_lea.vmem %s0, %s243
        %s245 = smul.u32 16, %s20
        %s246 = smul.u32 16, %s20
        %p247 = scmp.lt.s32.totalorder %s246, 31
        %s248 = scalar_select %p247, %s246, 31
        %s249 = smul.addr %s248, 8
        %s250 = scalar_lea.vmem %s1, %s249
        %s251 = smul.u32 16, %s20
        %v252 = vld [vmem:[%s244] sm:$0xff]
        %v253 = vld [vmem:[%s244 + $0x8] sm:$0xff]
        %v254 = vld [vmem:[%s244 + $0x10] sm:$0xff]
        %v255 = vld [vmem:[%s244 + $0x18] sm:$0xff]
        %v256 = vld [vmem:[%s244 + $0x20] sm:$0xff]
        %v257 = vld [vmem:[%s244 + $0x28] sm:$0xff]
        %v258 = vld [vmem:[%s244 + $0x30] sm:$0xff]
        %v259 = vld [vmem:[%s244 + $0x38] sm:$0xff]
        %v260 = vld [vmem:[%s244 + $0x40] sm:$0xff]
        %v261 = vld [vmem:[%s244 + $0x48] sm:$0xff]
        %v262 = vld [vmem:[%s244 + $0x50] sm:$0xff]
        %v263 = vld [vmem:[%s244 + $0x58] sm:$0xff]
        %v264 = vld [vmem:[%s244 + $0x60] sm:$0xff]
        %v265 = vld [vmem:[%s244 + $0x68] sm:$0xff]
        %v266 = vld [vmem:[%s244 + $0x70] sm:$0xff]
        %v267 = vld [vmem:[%s244 + $0x78] sm:$0xff]
        %v268 = vld [vmem:[%s250] sm:$0xff]
        %v269 = vld [vmem:[%s250 + $0x8] sm:$0xff]
        %v270 = vld [vmem:[%s250 + $0x10] sm:$0xff]
        %v271 = vld [vmem:[%s250 + $0x18] sm:$0xff]
        %v272 = vld [vmem:[%s250 + $0x20] sm:$0xff]
        %v273 = vld [vmem:[%s250 + $0x28] sm:$0xff]
        %v274 = vld [vmem:[%s250 + $0x30] sm:$0xff]
        %v275 = vld [vmem:[%s250 + $0x38] sm:$0xff]
        %v276 = vld [vmem:[%s250 + $0x40] sm:$0xff]
        %v277 = vld [vmem:[%s250 + $0x48] sm:$0xff]
        %v278 = vld [vmem:[%s250 + $0x50] sm:$0xff]
        %v279 = vld [vmem:[%s250 + $0x58] sm:$0xff]
        %v280 = vld [vmem:[%s250 + $0x60] sm:$0xff]
        %v281 = vld [vmem:[%s250 + $0x68] sm:$0xff]
        %v282 = vld [vmem:[%s250 + $0x70] sm:$0xff]
        %v283 = vld [vmem:[%s250 + $0x78] sm:$0xff]
        %v284 = vld [vmem:[#allocation2] sm:$0xf]
        %v285 = vld [vmem:[#allocation5] sm:$0xf]
        %v286 = vld [vmem:[#allocation5 + $0x4] sm:$0xf]
        %v287 = vld [vmem:[#allocation5 + $0x8] sm:$0xf]
        %v288 = vld [vmem:[#allocation5 + $0xc] sm:$0xf]
        %v289 = vld [vmem:[#allocation5 + $0x10] sm:$0xf]
        %v290 = vld [vmem:[#allocation5 + $0x14] sm:$0xf]
        %v291 = vld [vmem:[#allocation5 + $0x18] sm:$0xf]
        %v292 = vld [vmem:[#allocation5 + $0x1c] sm:$0xf]
        %v293 = vld [vmem:[#allocation5 + $0x20] sm:$0xf]
        %v294 = vld [vmem:[#allocation5 + $0x24] sm:$0xf]
        %v295 = vld [vmem:[#allocation5 + $0x28] sm:$0xf]
        %v296 = vld [vmem:[#allocation5 + $0x2c] sm:$0xf]
        %v297 = vld [vmem:[#allocation5 + $0x30] sm:$0xf]
        %v298 = vld [vmem:[#allocation5 + $0x34] sm:$0xf]
        %v299 = vld [vmem:[#allocation5 + $0x38] sm:$0xf]
        %v300 = vld [vmem:[#allocation5 + $0x3c] sm:$0xf]
        %v301 = vld [vmem:[#allocation5 + $0x40] sm:$0xf]
        %v302 = vld [vmem:[#allocation5 + $0x44] sm:$0xf]
        %v303 = vld [vmem:[#allocation5 + $0x48] sm:$0xf]
        %v304 = vld [vmem:[#allocation5 + $0x4c] sm:$0xf]
        %v305 = vld [vmem:[#allocation5 + $0x50] sm:$0xf]
        %v306 = vld [vmem:[#allocation5 + $0x54] sm:$0xf]
        %v307 = vld [vmem:[#allocation5 + $0x58] sm:$0xf]
        %v308 = vld [vmem:[#allocation5 + $0x5c] sm:$0xf]
        %v309 = vld [vmem:[#allocation5 + $0x60] sm:$0xf]
        %v310 = vld [vmem:[#allocation5 + $0x64] sm:$0xf]
        %v311 = vld [vmem:[#allocation5 + $0x68] sm:$0xf]
        %v312 = vld [vmem:[#allocation5 + $0x6c] sm:$0xf]
        %v313 = vld [vmem:[#allocation5 + $0x70] sm:$0xf]
        %v314 = vld [vmem:[#allocation5 + $0x74] sm:$0xf]
        %v315 = vld [vmem:[#allocation5 + $0x78] sm:$0xf]
        %v316 = vld [vmem:[#allocation5 + $0x7c] sm:$0xf]
        %v317 = vld [vmem:[#allocation5 + $0x80] sm:$0xf]
        %v318 = vld [vmem:[#allocation5 + $0x84] sm:$0xf]
        %v319 = vld [vmem:[#allocation5 + $0x88] sm:$0xf]
        %v320 = vld [vmem:[#allocation5 + $0x8c] sm:$0xf]
        %v321 = vld [vmem:[#allocation5 + $0x90] sm:$0xf]
        %v322 = vld [vmem:[#allocation5 + $0x94] sm:$0xf]
        %v323 = vld [vmem:[#allocation5 + $0x98] sm:$0xf]
        %v324 = vld [vmem:[#allocation5 + $0x9c] sm:$0xf]
        %v325 = vld [vmem:[#allocation5 + $0xa0] sm:$0xf]
        %v326 = vld [vmem:[#allocation5 + $0xa4] sm:$0xf]
        %v327 = vld [vmem:[#allocation5 + $0xa8] sm:$0xf]
        %v328 = vld [vmem:[#allocation5 + $0xac] sm:$0xf]
        %v329 = vld [vmem:[#allocation5 + $0xb0] sm:$0xf]
        %v330 = vld [vmem:[#allocation5 + $0xb4] sm:$0xf]
        %v331 = vld [vmem:[#allocation5 + $0xb8] sm:$0xf]
        %v332 = vld [vmem:[#allocation5 + $0xbc] sm:$0xf]
        %v333 = vld [vmem:[#allocation5 + $0xc0] sm:$0xf]
        %v334 = vld [vmem:[#allocation5 + $0xc4] sm:$0xf]
        %v335 = vld [vmem:[#allocation5 + $0xc8] sm:$0xf]
        %v336 = vld [vmem:[#allocation5 + $0xcc] sm:$0xf]
        %v337 = vld [vmem:[#allocation5 + $0xd0] sm:$0xf]
        %v338 = vld [vmem:[#allocation5 + $0xd4] sm:$0xf]
        %v339 = vld [vmem:[#allocation5 + $0xd8] sm:$0xf]
        %v340 = vld [vmem:[#allocation5 + $0xdc] sm:$0xf]
        %v341 = vld [vmem:[#allocation5 + $0xe0] sm:$0xf]
        %v342 = vld [vmem:[#allocation5 + $0xe4] sm:$0xf]
        %v343 = vld [vmem:[#allocation5 + $0xe8] sm:$0xf]
        %v344 = vld [vmem:[#allocation5 + $0xec] sm:$0xf]
        %v345 = vld [vmem:[#allocation5 + $0xf0] sm:$0xf]
        %v346 = vld [vmem:[#allocation5 + $0xf4] sm:$0xf]
        %v347 = vld [vmem:[#allocation5 + $0xf8] sm:$0xf]
        %v348 = vld [vmem:[#allocation5 + $0xfc] sm:$0xf]
        %s349 = smul.u32 %s20, 128
        %v350 = vlaneseq
        %v351 = vshrl.u32 %v350, 7
        %v352 = vadd.s32 %v351, 8
        %v353 = vadd.s32 %v351, 16
        %v354 = vadd.s32 %v351, 24
        %v355 = vadd.s32 %v351, 32
        %v356 = vadd.s32 %v351, 40
        %v357 = vadd.s32 %v351, 48
        %v358 = vadd.s32 %v351, 56
        %v359 = vadd.s32 %v351, 64
        %v360 = vadd.s32 %v351, 72
        %v361 = vadd.s32 %v351, 80
        %v362 = vadd.s32 %v351, 88
        %v363 = vadd.s32 %v351, 96
        %v364 = vadd.s32 %v351, 104
        %v365 = vadd.s32 %v351, 112
        %v366 = vadd.s32 %v351, 120
        %v367 = vstv %s349
        %v368 = vadd.s32 %v367, %v351
        %v369 = vadd.s32 %v367, %v352
        %v370 = vadd.s32 %v367, %v353
        %v371 = vadd.s32 %v367, %v354
        %v372 = vadd.s32 %v367, %v355
        %v373 = vadd.s32 %v367, %v356
        %v374 = vadd.s32 %v367, %v357
        %v375 = vadd.s32 %v367, %v358
        %v376 = vadd.s32 %v367, %v359
        %v377 = vadd.s32 %v367, %v360
        %v378 = vadd.s32 %v367, %v361
        %v379 = vadd.s32 %v367, %v362
        %v380 = vadd.s32 %v367, %v363
        %v381 = vadd.s32 %v367, %v364
        %v382 = vadd.s32 %v367, %v365
        %v383 = vadd.s32 %v367, %v366
        %vm384 = vcmp.lt.s32.totalorder %v368, 200
        %vm385 = vcmp.lt.s32.totalorder %v369, 200
        %vm386 = vcmp.lt.s32.totalorder %v370, 200
        %vm387 = vcmp.lt.s32.totalorder %v371, 200
        %vm388 = vcmp.lt.s32.totalorder %v372, 200
        %vm389 = vcmp.lt.s32.totalorder %v373, 200
        %vm390 = vcmp.lt.s32.totalorder %v374, 200
        %vm391 = vcmp.lt.s32.totalorder %v375, 200
        %vm392 = vcmp.lt.s32.totalorder %v376, 200
        %vm393 = vcmp.lt.s32.totalorder %v377, 200
        %vm394 = vcmp.lt.s32.totalorder %v378, 200
        %vm395 = vcmp.lt.s32.totalorder %v379, 200
        %vm396 = vcmp.lt.s32.totalorder %v380, 200
        %vm397 = vcmp.lt.s32.totalorder %v381, 200
        %vm398 = vcmp.lt.s32.totalorder %v382, 200
        %vm399 = vcmp.lt.s32.totalorder %v383, 200
        %v400 = vsel %vm384, 1, 0
        %v401 = vsel %vm385, 1, 0
        %v402 = vsel %vm386, 1, 0
        %v403 = vsel %vm387, 1, 0
        %v404 = vsel %vm388, 1, 0
        %v405 = vsel %vm389, 1, 0
        %v406 = vsel %vm390, 1, 0
        %v407 = vsel %vm391, 1, 0
        %v408 = vsel %vm392, 1, 0
        %v409 = vsel %vm393, 1, 0
        %v410 = vsel %vm394, 1, 0
        %v411 = vsel %vm395, 1, 0
        %v412 = vsel %vm396, 1, 0
        %v413 = vsel %vm397, 1, 0
        %v414 = vsel %vm398, 1, 0
        %v415 = vsel %vm399, 1, 0
        %v416 = vcvt.s32.f32 %v400
        %v417 = vcvt.s32.f32 %v401
        %v418 = vcvt.s32.f32 %v402
        %v419 = vcvt.s32.f32 %v403
        %v420 = vcvt.s32.f32 %v404
        %v421 = vcvt.s32.f32 %v405
        %v422 = vcvt.s32.f32 %v406
        %v423 = vcvt.s32.f32 %v407
        %v424 = vcvt.s32.f32 %v408
        %v425 = vcvt.s32.f32 %v409
        %v426 = vcvt.s32.f32 %v410
        %v427 = vcvt.s32.f32 %v411
        %v428 = vcvt.s32.f32 %v412
        %v429 = vcvt.s32.f32 %v413
        %v430 = vcvt.s32.f32 %v414
        %v431 = vcvt.s32.f32 %v415
        %v432 = vperm.slane %v284, 0
        %v433 = vsub.f32 %v252, %v432
        %v434 = vsub.f32 %v253, %v432
        %v435 = vsub.f32 %v254, %v432
        %v436 = vsub.f32 %v255, %v432
        %v437 = vsub.f32 %v256, %v432
        %v438 = vsub.f32 %v257, %v432
        %v439 = vsub.f32 %v258, %v432
        %v440 = vsub.f32 %v259, %v432
        %v441 = vsub.f32 %v260, %v432
        %v442 = vsub.f32 %v261, %v432
        %v443 = vsub.f32 %v262, %v432
        %v444 = vsub.f32 %v263, %v432
        %v445 = vsub.f32 %v264, %v432
        %v446 = vsub.f32 %v265, %v432
        %v447 = vsub.f32 %v266, %v432
        %v448 = vsub.f32 %v267, %v432
        %v449 = vpack.c.bf16 %v434, %v433
        %v450 = vpack.c.bf16 %v436, %v435
        %v451 = vpack.c.bf16 %v438, %v437
        %v452 = vpack.c.bf16 %v440, %v439
        %v453 = vpack.c.bf16 %v442, %v441
        %v454 = vpack.c.bf16 %v444, %v443
        %v455 = vpack.c.bf16 %v446, %v445
        %v456 = vpack.c.bf16 %v448, %v447
        %v473 = vunpack.c.l.b16 %v285
        %v474 = vunpack.c.l.b16 %v286
        %v475 = vunpack.c.l.b16 %v287
        %v476 = vunpack.c.l.b16 %v288
        %v477 = vunpack.c.l.b16 %v289
        %v478 = vunpack.c.l.b16 %v290
        %v479 = vunpack.c.l.b16 %v291
        %v480 = vunpack.c.l.b16 %v292
        %v481 = vunpack.c.l.b16 %v293
        %v482 = vunpack.c.l.b16 %v294
        %v483 = vunpack.c.l.b16 %v295
        %v484 = vunpack.c.l.b16 %v296
        %v485 = vunpack.c.l.b16 %v297
        %v486 = vunpack.c.l.b16 %v298
        %v487 = vunpack.c.l.b16 %v299
        %v488 = vunpack.c.l.b16 %v300
        %v489 = vpack.c.b16 %v474, %v473
        %v490 = vpack.c.b16 %v476, %v475
        %v491 = vpack.c.b16 %v478, %v477
        %v492 = vpack.c.b16 %v480, %v479
        %v493 = vpack.c.b16 %v482, %v481
        %v494 = vpack.c.b16 %v484, %v483
        %v495 = vpack.c.b16 %v486, %v485
        %v496 = vpack.c.b16 %v488, %v487
        %505 = vmatpush.bf16.msra.mxu0 %v496
        %506 = vmatpush.bf16.msra.mxu0 %v495
        %507 = vmatpush.bf16.msra.mxu0 %v494
        %508 = vmatpush.bf16.msra.mxu0 %v493
        %509 = vmatpush.bf16.msra.mxu0 %v492
        %510 = vmatpush.bf16.msra.mxu0 %v491
        %511 = vmatpush.bf16.msra.mxu0 %v490
        %512 = vmatpush.bf16.msra.mxu0 %v489
        %513 = vmatmul.bf16.gmra.mxu0 %v449
        %v514 = vpop.f32.mrf.mxu0
        %v515 = vadd.f32 0.0, %v514
        %v516 = vpop.f32.mrf.mxu0
        %v517 = vadd.f32 0.0, %v516
        %518 = vmatmul.bf16.gmra.mxu0 %v450
        %v519 = vpop.f32.mrf.mxu0
        %v520 = vadd.f32 0.0, %v519
        %v521 = vpop.f32.mrf.mxu0
        %v522 = vadd.f32 0.0, %v521
        %523 = vmatmul.bf16.gmra.mxu0 %v451
        %v524 = vpop.f32.mrf.mxu0
        %v525 = vadd.f32 0.0, %v524
        %v526 = vpop.f32.mrf.mxu0
        %v527 = vadd.f32 0.0, %v526
        %528 = vmatmul.bf16.gmra.mxu0 %v452
        %v529 = vpop.f32.mrf.mxu0
        %v530 = vadd.f32 0.0, %v529
        %v531 = vpop.f32.mrf.mxu0
        %v532 = vadd.f32 0.0, %v531
        %533 = vmatmul.bf16.gmra.mxu0 %v453
        %v534 = vpop.f32.mrf.mxu0
        %v535 = vadd.f32 0.0, %v534
        %v536 = vpop.f32.mrf.mxu0
        %v537 = vadd.f32 0.0, %v536
        %538 = vmatmul.bf16.gmra.mxu0 %v454
        %v539 = vpop.f32.mrf.mxu0
        %v540 = vadd.f32 0.0, %v539
        %v541 = vpop.f32.mrf.mxu0
        %v542 = vadd.f32 0.0, %v541
        %543 = vmatmul.bf16.gmra.mxu0 %v455
        %v544 = vpop.f32.mrf.mxu0
        %v545 = vadd.f32 0.0, %v544
        %v546 = vpop.f32.mrf.mxu0
        %v547 = vadd.f32 0.0, %v546
        %548 = vmatmul.bf16.gmra.mxu0 %v456
        %v549 = vpop.f32.mrf.mxu0
        %v550 = vadd.f32 0.0, %v549
        %v551 = vpop.f32.mrf.mxu0
        %v552 = vadd.f32 0.0, %v551
        %553 = vdwg.mxu0
        %v554 = vmul.f32 %v515, %v515
        %v555 = vmul.f32 %v517, %v517
        %v556 = vmul.f32 %v520, %v520
        %v557 = vmul.f32 %v522, %v522
        %v558 = vmul.f32 %v525, %v525
        %v559 = vmul.f32 %v527, %v527
        %v560 = vmul.f32 %v530, %v530
        %v561 = vmul.f32 %v532, %v532
        %v562 = vmul.f32 %v535, %v535
        %v563 = vmul.f32 %v537, %v537
        %v564 = vmul.f32 %v540, %v540
        %v565 = vmul.f32 %v542, %v542
        %v566 = vmul.f32 %v545, %v545
        %v567 = vmul.f32 %v547, %v547
        %v568 = vmul.f32 %v550, %v550
        %v569 = vmul.f32 %v552, %v552
        %570 = vadd.xlane.f32.xlu0 %v554
        %v571 = vpop.xlane.xlu0 %570
        %572 = vadd.xlane.f32.xlu0 %v555
        %v573 = vpop.xlane.xlu0 %572
        %574 = vadd.xlane.f32.xlu0 %v556
        %v575 = vpop.xlane.xlu0 %574
        %576 = vadd.xlane.f32.xlu0 %v557
        %v577 = vpop.xlane.xlu0 %576
        %578 = vadd.xlane.f32.xlu0 %v558
        %v579 = vpop.xlane.xlu0 %578
        %580 = vadd.xlane.f32.xlu0 %v559
        %v581 = vpop.xlane.xlu0 %580
        %582 = vadd.xlane.f32.xlu0 %v560
        %v583 = vpop.xlane.xlu0 %582
        %584 = vadd.xlane.f32.xlu0 %v561
        %v585 = vpop.xlane.xlu0 %584
        %586 = vadd.xlane.f32.xlu0 %v562
        %v587 = vpop.xlane.xlu0 %586
        %588 = vadd.xlane.f32.xlu0 %v563
        %v589 = vpop.xlane.xlu0 %588
        %590 = vadd.xlane.f32.xlu0 %v564
        %v591 = vpop.xlane.xlu0 %590
        %592 = vadd.xlane.f32.xlu0 %v565
        %v593 = vpop.xlane.xlu0 %592
        %594 = vadd.xlane.f32.xlu0 %v566
        %v595 = vpop.xlane.xlu0 %594
        %596 = vadd.xlane.f32.xlu0 %v567
        %v597 = vpop.xlane.xlu0 %596
        %598 = vadd.xlane.f32.xlu0 %v568
        %v599 = vpop.xlane.xlu0 %598
        %600 = vadd.xlane.f32.xlu0 %v569
        %v601 = vpop.xlane.xlu0 %600
        %v602 = vadd.f32 %v571, 0.0
        %v603 = vadd.f32 %v573, 0.0
        %v604 = vadd.f32 %v575, 0.0
        %v605 = vadd.f32 %v577, 0.0
        %v606 = vadd.f32 %v579, 0.0
        %v607 = vadd.f32 %v581, 0.0
        %v608 = vadd.f32 %v583, 0.0
        %v609 = vadd.f32 %v585, 0.0
        %v610 = vadd.f32 %v587, 0.0
        %v611 = vadd.f32 %v589, 0.0
        %v612 = vadd.f32 %v591, 0.0
        %v613 = vadd.f32 %v593, 0.0
        %v614 = vadd.f32 %v595, 0.0
        %v615 = vadd.f32 %v597, 0.0
        %v616 = vadd.f32 %v599, 0.0
        %v617 = vadd.f32 %v601, 0.0
        %vm618 = vcmp.eq.s32.totalorder %v268, 0
        %vm619 = vcmp.eq.s32.totalorder %v269, 0
        %vm620 = vcmp.eq.s32.totalorder %v270, 0
        %vm621 = vcmp.eq.s32.totalorder %v271, 0
        %vm622 = vcmp.eq.s32.totalorder %v272, 0
        %vm623 = vcmp.eq.s32.totalorder %v273, 0
        %vm624 = vcmp.eq.s32.totalorder %v274, 0
        %vm625 = vcmp.eq.s32.totalorder %v275, 0
        %vm626 = vcmp.eq.s32.totalorder %v276, 0
        %vm627 = vcmp.eq.s32.totalorder %v277, 0
        %vm628 = vcmp.eq.s32.totalorder %v278, 0
        %vm629 = vcmp.eq.s32.totalorder %v279, 0
        %vm630 = vcmp.eq.s32.totalorder %v280, 0
        %vm631 = vcmp.eq.s32.totalorder %v281, 0
        %vm632 = vcmp.eq.s32.totalorder %v282, 0
        %vm633 = vcmp.eq.s32.totalorder %v283, 0
        %v634 = vsel %vm618, %v571, 0.0
        %v635 = vsel %vm619, %v573, 0.0
        %v636 = vsel %vm620, %v575, 0.0
        %v637 = vsel %vm621, %v577, 0.0
        %v638 = vsel %vm622, %v579, 0.0
        %v639 = vsel %vm623, %v581, 0.0
        %v640 = vsel %vm624, %v583, 0.0
        %v641 = vsel %vm625, %v585, 0.0
        %v642 = vsel %vm626, %v587, 0.0
        %v643 = vsel %vm627, %v589, 0.0
        %v644 = vsel %vm628, %v591, 0.0
        %v645 = vsel %vm629, %v593, 0.0
        %v646 = vsel %vm630, %v595, 0.0
        %v647 = vsel %vm631, %v597, 0.0
        %v648 = vsel %vm632, %v599, 0.0
        %v649 = vsel %vm633, %v601, 0.0
        %v650 = vadd.f32 %v634, 0.0
        %v651 = vadd.f32 %v635, 0.0
        %v652 = vadd.f32 %v636, 0.0
        %v653 = vadd.f32 %v637, 0.0
        %v654 = vadd.f32 %v638, 0.0
        %v655 = vadd.f32 %v639, 0.0
        %v656 = vadd.f32 %v640, 0.0
        %v657 = vadd.f32 %v641, 0.0
        %v658 = vadd.f32 %v642, 0.0
        %v659 = vadd.f32 %v643, 0.0
        %v660 = vadd.f32 %v644, 0.0
        %v661 = vadd.f32 %v645, 0.0
        %v662 = vadd.f32 %v646, 0.0
        %v663 = vadd.f32 %v647, 0.0
        %v664 = vadd.f32 %v648, 0.0
        %v665 = vadd.f32 %v649, 0.0
        %v666 = vperm.slane %v284, 1
        %v667 = vsub.f32 %v252, %v666
        %v668 = vsub.f32 %v253, %v666
        %v669 = vsub.f32 %v254, %v666
        %v670 = vsub.f32 %v255, %v666
        %v671 = vsub.f32 %v256, %v666
        %v672 = vsub.f32 %v257, %v666
        %v673 = vsub.f32 %v258, %v666
        %v674 = vsub.f32 %v259, %v666
        %v675 = vsub.f32 %v260, %v666
        %v676 = vsub.f32 %v261, %v666
        %v677 = vsub.f32 %v262, %v666
        %v678 = vsub.f32 %v263, %v666
        %v679 = vsub.f32 %v264, %v666
        %v680 = vsub.f32 %v265, %v666
        %v681 = vsub.f32 %v266, %v666
        %v682 = vsub.f32 %v267, %v666
        %v683 = vpack.c.bf16 %v668, %v667
        %v684 = vpack.c.bf16 %v670, %v669
        %v685 = vpack.c.bf16 %v672, %v671
        %v686 = vpack.c.bf16 %v674, %v673
        %v687 = vpack.c.bf16 %v676, %v675
        %v688 = vpack.c.bf16 %v678, %v677
        %v689 = vpack.c.bf16 %v680, %v679
        %v690 = vpack.c.bf16 %v682, %v681
        %v707 = vunpack.c.l.b16 %v301
        %v708 = vunpack.c.l.b16 %v302
        %v709 = vunpack.c.l.b16 %v303
        %v710 = vunpack.c.l.b16 %v304
        %v711 = vunpack.c.l.b16 %v305
        %v712 = vunpack.c.l.b16 %v306
        %v713 = vunpack.c.l.b16 %v307
        %v714 = vunpack.c.l.b16 %v308
        %v715 = vunpack.c.l.b16 %v309
        %v716 = vunpack.c.l.b16 %v310
        %v717 = vunpack.c.l.b16 %v311
        %v718 = vunpack.c.l.b16 %v312
        %v719 = vunpack.c.l.b16 %v313
        %v720 = vunpack.c.l.b16 %v314
        %v721 = vunpack.c.l.b16 %v315
        %v722 = vunpack.c.l.b16 %v316
        %v723 = vpack.c.b16 %v708, %v707
        %v724 = vpack.c.b16 %v710, %v709
        %v725 = vpack.c.b16 %v712, %v711
        %v726 = vpack.c.b16 %v714, %v713
        %v727 = vpack.c.b16 %v716, %v715
        %v728 = vpack.c.b16 %v718, %v717
        %v729 = vpack.c.b16 %v720, %v719
        %v730 = vpack.c.b16 %v722, %v721
        %739 = vmatpush.bf16.msra.mxu0 %v730
        %740 = vmatpush.bf16.msra.mxu0 %v729
        %741 = vmatpush.bf16.msra.mxu0 %v728
        %742 = vmatpush.bf16.msra.mxu0 %v727
        %743 = vmatpush.bf16.msra.mxu0 %v726
        %744 = vmatpush.bf16.msra.mxu0 %v725
        %745 = vmatpush.bf16.msra.mxu0 %v724
        %746 = vmatpush.bf16.msra.mxu0 %v723
        %747 = vmatmul.bf16.gmra.mxu0 %v683
        %v748 = vpop.f32.mrf.mxu0
        %v749 = vadd.f32 0.0, %v748
        %v750 = vpop.f32.mrf.mxu0
        %v751 = vadd.f32 0.0, %v750
        %752 = vmatmul.bf16.gmra.mxu0 %v684
        %v753 = vpop.f32.mrf.mxu0
        %v754 = vadd.f32 0.0, %v753
        %v755 = vpop.f32.mrf.mxu0
        %v756 = vadd.f32 0.0, %v755
        %757 = vmatmul.bf16.gmra.mxu0 %v685
        %v758 = vpop.f32.mrf.mxu0
        %v759 = vadd.f32 0.0, %v758
        %v760 = vpop.f32.mrf.mxu0
        %v761 = vadd.f32 0.0, %v760
        %762 = vmatmul.bf16.gmra.mxu0 %v686
        %v763 = vpop.f32.mrf.mxu0
        %v764 = vadd.f32 0.0, %v763
        %v765 = vpop.f32.mrf.mxu0
        %v766 = vadd.f32 0.0, %v765
        %767 = vmatmul.bf16.gmra.mxu0 %v687
        %v768 = vpop.f32.mrf.mxu0
        %v769 = vadd.f32 0.0, %v768
        %v770 = vpop.f32.mrf.mxu0
        %v771 = vadd.f32 0.0, %v770
        %772 = vmatmul.bf16.gmra.mxu0 %v688
        %v773 = vpop.f32.mrf.mxu0
        %v774 = vadd.f32 0.0, %v773
        %v775 = vpop.f32.mrf.mxu0
        %v776 = vadd.f32 0.0, %v775
        %777 = vmatmul.bf16.gmra.mxu0 %v689
        %v778 = vpop.f32.mrf.mxu0
        %v779 = vadd.f32 0.0, %v778
        %v780 = vpop.f32.mrf.mxu0
        %v781 = vadd.f32 0.0, %v780
        %782 = vmatmul.bf16.gmra.mxu0 %v690
        %v783 = vpop.f32.mrf.mxu0
        %v784 = vadd.f32 0.0, %v783
        %v785 = vpop.f32.mrf.mxu0
        %v786 = vadd.f32 0.0, %v785
        %787 = vdwg.mxu0
        %v788 = vmul.f32 %v749, %v749
        %v789 = vmul.f32 %v751, %v751
        %v790 = vmul.f32 %v754, %v754
        %v791 = vmul.f32 %v756, %v756
        %v792 = vmul.f32 %v759, %v759
        %v793 = vmul.f32 %v761, %v761
        %v794 = vmul.f32 %v764, %v764
        %v795 = vmul.f32 %v766, %v766
        %v796 = vmul.f32 %v769, %v769
        %v797 = vmul.f32 %v771, %v771
        %v798 = vmul.f32 %v774, %v774
        %v799 = vmul.f32 %v776, %v776
        %v800 = vmul.f32 %v779, %v779
        %v801 = vmul.f32 %v781, %v781
        %v802 = vmul.f32 %v784, %v784
        %v803 = vmul.f32 %v786, %v786
        %804 = vadd.xlane.f32.xlu0 %v788
        %v805 = vpop.xlane.xlu0 %804
        %806 = vadd.xlane.f32.xlu0 %v789
        %v807 = vpop.xlane.xlu0 %806
        %808 = vadd.xlane.f32.xlu0 %v790
        %v809 = vpop.xlane.xlu0 %808
        %810 = vadd.xlane.f32.xlu0 %v791
        %v811 = vpop.xlane.xlu0 %810
        %812 = vadd.xlane.f32.xlu0 %v792
        %v813 = vpop.xlane.xlu0 %812
        %814 = vadd.xlane.f32.xlu0 %v793
        %v815 = vpop.xlane.xlu0 %814
        %816 = vadd.xlane.f32.xlu0 %v794
        %v817 = vpop.xlane.xlu0 %816
        %818 = vadd.xlane.f32.xlu0 %v795
        %v819 = vpop.xlane.xlu0 %818
        %820 = vadd.xlane.f32.xlu0 %v796
        %v821 = vpop.xlane.xlu0 %820
        %822 = vadd.xlane.f32.xlu0 %v797
        %v823 = vpop.xlane.xlu0 %822
        %824 = vadd.xlane.f32.xlu0 %v798
        %v825 = vpop.xlane.xlu0 %824
        %826 = vadd.xlane.f32.xlu0 %v799
        %v827 = vpop.xlane.xlu0 %826
        %828 = vadd.xlane.f32.xlu0 %v800
        %v829 = vpop.xlane.xlu0 %828
        %830 = vadd.xlane.f32.xlu0 %v801
        %v831 = vpop.xlane.xlu0 %830
        %832 = vadd.xlane.f32.xlu0 %v802
        %v833 = vpop.xlane.xlu0 %832
        %834 = vadd.xlane.f32.xlu0 %v803
        %v835 = vpop.xlane.xlu0 %834
        %v836 = vadd.f32 %v602, %v805
        %v837 = vadd.f32 %v603, %v807
        %v838 = vadd.f32 %v604, %v809
        %v839 = vadd.f32 %v605, %v811
        %v840 = vadd.f32 %v606, %v813
        %v841 = vadd.f32 %v607, %v815
        %v842 = vadd.f32 %v608, %v817
        %v843 = vadd.f32 %v609, %v819
        %v844 = vadd.f32 %v610, %v821
        %v845 = vadd.f32 %v611, %v823
        %v846 = vadd.f32 %v612, %v825
        %v847 = vadd.f32 %v613, %v827
        %v848 = vadd.f32 %v614, %v829
        %v849 = vadd.f32 %v615, %v831
        %v850 = vadd.f32 %v616, %v833
        %v851 = vadd.f32 %v617, %v835
        %vm852 = vcmp.eq.s32.totalorder %v268, 1
        %vm853 = vcmp.eq.s32.totalorder %v269, 1
        %vm854 = vcmp.eq.s32.totalorder %v270, 1
        %vm855 = vcmp.eq.s32.totalorder %v271, 1
        %vm856 = vcmp.eq.s32.totalorder %v272, 1
        %vm857 = vcmp.eq.s32.totalorder %v273, 1
        %vm858 = vcmp.eq.s32.totalorder %v274, 1
        %vm859 = vcmp.eq.s32.totalorder %v275, 1
        %vm860 = vcmp.eq.s32.totalorder %v276, 1
        %vm861 = vcmp.eq.s32.totalorder %v277, 1
        %vm862 = vcmp.eq.s32.totalorder %v278, 1
        %vm863 = vcmp.eq.s32.totalorder %v279, 1
        %vm864 = vcmp.eq.s32.totalorder %v280, 1
        %vm865 = vcmp.eq.s32.totalorder %v281, 1
        %vm866 = vcmp.eq.s32.totalorder %v282, 1
        %vm867 = vcmp.eq.s32.totalorder %v283, 1
        %v868 = vsel %vm852, %v805, 0.0
        %v869 = vsel %vm853, %v807, 0.0
        %v870 = vsel %vm854, %v809, 0.0
        %v871 = vsel %vm855, %v811, 0.0
        %v872 = vsel %vm856, %v813, 0.0
        %v873 = vsel %vm857, %v815, 0.0
        %v874 = vsel %vm858, %v817, 0.0
        %v875 = vsel %vm859, %v819, 0.0
        %v876 = vsel %vm860, %v821, 0.0
        %v877 = vsel %vm861, %v823, 0.0
        %v878 = vsel %vm862, %v825, 0.0
        %v879 = vsel %vm863, %v827, 0.0
        %v880 = vsel %vm864, %v829, 0.0
        %v881 = vsel %vm865, %v831, 0.0
        %v882 = vsel %vm866, %v833, 0.0
        %v883 = vsel %vm867, %v835, 0.0
        %v884 = vadd.f32 %v650, %v868
        %v885 = vadd.f32 %v651, %v869
        %v886 = vadd.f32 %v652, %v870
        %v887 = vadd.f32 %v653, %v871
        %v888 = vadd.f32 %v654, %v872
        %v889 = vadd.f32 %v655, %v873
        %v890 = vadd.f32 %v656, %v874
        %v891 = vadd.f32 %v657, %v875
        %v892 = vadd.f32 %v658, %v876
        %v893 = vadd.f32 %v659, %v877
        %v894 = vadd.f32 %v660, %v878
        %v895 = vadd.f32 %v661, %v879
        %v896 = vadd.f32 %v662, %v880
        %v897 = vadd.f32 %v663, %v881
        %v898 = vadd.f32 %v664, %v882
        %v899 = vadd.f32 %v665, %v883
        %v900 = vperm.slane %v284, 2
        %v901 = vsub.f32 %v252, %v900
        %v902 = vsub.f32 %v253, %v900
        %v903 = vsub.f32 %v254, %v900
        %v904 = vsub.f32 %v255, %v900
        %v905 = vsub.f32 %v256, %v900
        %v906 = vsub.f32 %v257, %v900
        %v907 = vsub.f32 %v258, %v900
        %v908 = vsub.f32 %v259, %v900
        %v909 = vsub.f32 %v260, %v900
        %v910 = vsub.f32 %v261, %v900
        %v911 = vsub.f32 %v262, %v900
        %v912 = vsub.f32 %v263, %v900
        %v913 = vsub.f32 %v264, %v900
        %v914 = vsub.f32 %v265, %v900
        %v915 = vsub.f32 %v266, %v900
        %v916 = vsub.f32 %v267, %v900
        %v917 = vpack.c.bf16 %v902, %v901
        %v918 = vpack.c.bf16 %v904, %v903
        %v919 = vpack.c.bf16 %v906, %v905
        %v920 = vpack.c.bf16 %v908, %v907
        %v921 = vpack.c.bf16 %v910, %v909
        %v922 = vpack.c.bf16 %v912, %v911
        %v923 = vpack.c.bf16 %v914, %v913
        %v924 = vpack.c.bf16 %v916, %v915
        %v941 = vunpack.c.l.b16 %v317
        %v942 = vunpack.c.l.b16 %v318
        %v943 = vunpack.c.l.b16 %v319
        %v944 = vunpack.c.l.b16 %v320
        %v945 = vunpack.c.l.b16 %v321
        %v946 = vunpack.c.l.b16 %v322
        %v947 = vunpack.c.l.b16 %v323
        %v948 = vunpack.c.l.b16 %v324
        %v949 = vunpack.c.l.b16 %v325
        %v950 = vunpack.c.l.b16 %v326
        %v951 = vunpack.c.l.b16 %v327
        %v952 = vunpack.c.l.b16 %v328
        %v953 = vunpack.c.l.b16 %v329
        %v954 = vunpack.c.l.b16 %v330
        %v955 = vunpack.c.l.b16 %v331
        %v956 = vunpack.c.l.b16 %v332
        %v957 = vpack.c.b16 %v942, %v941
        %v958 = vpack.c.b16 %v944, %v943
        %v959 = vpack.c.b16 %v946, %v945
        %v960 = vpack.c.b16 %v948, %v947
        %v961 = vpack.c.b16 %v950, %v949
        %v962 = vpack.c.b16 %v952, %v951
        %v963 = vpack.c.b16 %v954, %v953
        %v964 = vpack.c.b16 %v956, %v955
        %973 = vmatpush.bf16.msra.mxu0 %v964
        %974 = vmatpush.bf16.msra.mxu0 %v963
        %975 = vmatpush.bf16.msra.mxu0 %v962
        %976 = vmatpush.bf16.msra.mxu0 %v961
        %977 = vmatpush.bf16.msra.mxu0 %v960
        %978 = vmatpush.bf16.msra.mxu0 %v959
        %979 = vmatpush.bf16.msra.mxu0 %v958
        %980 = vmatpush.bf16.msra.mxu0 %v957
        %981 = vmatmul.bf16.gmra.mxu0 %v917
        %v982 = vpop.f32.mrf.mxu0
        %v983 = vadd.f32 0.0, %v982
        %v984 = vpop.f32.mrf.mxu0
        %v985 = vadd.f32 0.0, %v984
        %986 = vmatmul.bf16.gmra.mxu0 %v918
        %v987 = vpop.f32.mrf.mxu0
        %v988 = vadd.f32 0.0, %v987
        %v989 = vpop.f32.mrf.mxu0
        %v990 = vadd.f32 0.0, %v989
        %991 = vmatmul.bf16.gmra.mxu0 %v919
        %v992 = vpop.f32.mrf.mxu0
        %v993 = vadd.f32 0.0, %v992
        %v994 = vpop.f32.mrf.mxu0
        %v995 = vadd.f32 0.0, %v994
        %996 = vmatmul.bf16.gmra.mxu0 %v920
        %v997 = vpop.f32.mrf.mxu0
        %v998 = vadd.f32 0.0, %v997
        %v999 = vpop.f32.mrf.mxu0
        %v1000 = vadd.f32 0.0, %v999
        %1001 = vmatmul.bf16.gmra.mxu0 %v921
        %v1002 = vpop.f32.mrf.mxu0
        %v1003 = vadd.f32 0.0, %v1002
        %v1004 = vpop.f32.mrf.mxu0
        %v1005 = vadd.f32 0.0, %v1004
        %1006 = vmatmul.bf16.gmra.mxu0 %v922
        %v1007 = vpop.f32.mrf.mxu0
        %v1008 = vadd.f32 0.0, %v1007
        %v1009 = vpop.f32.mrf.mxu0
        %v1010 = vadd.f32 0.0, %v1009
        %1011 = vmatmul.bf16.gmra.mxu0 %v923
        %v1012 = vpop.f32.mrf.mxu0
        %v1013 = vadd.f32 0.0, %v1012
        %v1014 = vpop.f32.mrf.mxu0
        %v1015 = vadd.f32 0.0, %v1014
        %1016 = vmatmul.bf16.gmra.mxu0 %v924
        %v1017 = vpop.f32.mrf.mxu0
        %v1018 = vadd.f32 0.0, %v1017
        %v1019 = vpop.f32.mrf.mxu0
        %v1020 = vadd.f32 0.0, %v1019
        %1021 = vdwg.mxu0
        %v1022 = vmul.f32 %v983, %v983
        %v1023 = vmul.f32 %v985, %v985
        %v1024 = vmul.f32 %v988, %v988
        %v1025 = vmul.f32 %v990, %v990
        %v1026 = vmul.f32 %v993, %v993
        %v1027 = vmul.f32 %v995, %v995
        %v1028 = vmul.f32 %v998, %v998
        %v1029 = vmul.f32 %v1000, %v1000
        %v1030 = vmul.f32 %v1003, %v1003
        %v1031 = vmul.f32 %v1005, %v1005
        %v1032 = vmul.f32 %v1008, %v1008
        %v1033 = vmul.f32 %v1010, %v1010
        %v1034 = vmul.f32 %v1013, %v1013
        %v1035 = vmul.f32 %v1015, %v1015
        %v1036 = vmul.f32 %v1018, %v1018
        %v1037 = vmul.f32 %v1020, %v1020
        %1038 = vadd.xlane.f32.xlu0 %v1022
        %v1039 = vpop.xlane.xlu0 %1038
        %1040 = vadd.xlane.f32.xlu0 %v1023
        %v1041 = vpop.xlane.xlu0 %1040
        %1042 = vadd.xlane.f32.xlu0 %v1024
        %v1043 = vpop.xlane.xlu0 %1042
        %1044 = vadd.xlane.f32.xlu0 %v1025
        %v1045 = vpop.xlane.xlu0 %1044
        %1046 = vadd.xlane.f32.xlu0 %v1026
        %v1047 = vpop.xlane.xlu0 %1046
        %1048 = vadd.xlane.f32.xlu0 %v1027
        %v1049 = vpop.xlane.xlu0 %1048
        %1050 = vadd.xlane.f32.xlu0 %v1028
        %v1051 = vpop.xlane.xlu0 %1050
        %1052 = vadd.xlane.f32.xlu0 %v1029
        %v1053 = vpop.xlane.xlu0 %1052
        %1054 = vadd.xlane.f32.xlu0 %v1030
        %v1055 = vpop.xlane.xlu0 %1054
        %1056 = vadd.xlane.f32.xlu0 %v1031
        %v1057 = vpop.xlane.xlu0 %1056
        %1058 = vadd.xlane.f32.xlu0 %v1032
        %v1059 = vpop.xlane.xlu0 %1058
        %1060 = vadd.xlane.f32.xlu0 %v1033
        %v1061 = vpop.xlane.xlu0 %1060
        %1062 = vadd.xlane.f32.xlu0 %v1034
        %v1063 = vpop.xlane.xlu0 %1062
        %1064 = vadd.xlane.f32.xlu0 %v1035
        %v1065 = vpop.xlane.xlu0 %1064
        %1066 = vadd.xlane.f32.xlu0 %v1036
        %v1067 = vpop.xlane.xlu0 %1066
        %1068 = vadd.xlane.f32.xlu0 %v1037
        %v1069 = vpop.xlane.xlu0 %1068
        %v1070 = vadd.f32 %v836, %v1039
        %v1071 = vadd.f32 %v837, %v1041
        %v1072 = vadd.f32 %v838, %v1043
        %v1073 = vadd.f32 %v839, %v1045
        %v1074 = vadd.f32 %v840, %v1047
        %v1075 = vadd.f32 %v841, %v1049
        %v1076 = vadd.f32 %v842, %v1051
        %v1077 = vadd.f32 %v843, %v1053
        %v1078 = vadd.f32 %v844, %v1055
        %v1079 = vadd.f32 %v845, %v1057
        %v1080 = vadd.f32 %v846, %v1059
        %v1081 = vadd.f32 %v847, %v1061
        %v1082 = vadd.f32 %v848, %v1063
        %v1083 = vadd.f32 %v849, %v1065
        %v1084 = vadd.f32 %v850, %v1067
        %v1085 = vadd.f32 %v851, %v1069
        %vm1086 = vcmp.eq.s32.totalorder %v268, 2
        %vm1087 = vcmp.eq.s32.totalorder %v269, 2
        %vm1088 = vcmp.eq.s32.totalorder %v270, 2
        %vm1089 = vcmp.eq.s32.totalorder %v271, 2
        %vm1090 = vcmp.eq.s32.totalorder %v272, 2
        %vm1091 = vcmp.eq.s32.totalorder %v273, 2
        %vm1092 = vcmp.eq.s32.totalorder %v274, 2
        %vm1093 = vcmp.eq.s32.totalorder %v275, 2
        %vm1094 = vcmp.eq.s32.totalorder %v276, 2
        %vm1095 = vcmp.eq.s32.totalorder %v277, 2
        %vm1096 = vcmp.eq.s32.totalorder %v278, 2
        %vm1097 = vcmp.eq.s32.totalorder %v279, 2
        %vm1098 = vcmp.eq.s32.totalorder %v280, 2
        %vm1099 = vcmp.eq.s32.totalorder %v281, 2
        %vm1100 = vcmp.eq.s32.totalorder %v282, 2
        %vm1101 = vcmp.eq.s32.totalorder %v283, 2
        %v1102 = vsel %vm1086, %v1039, 0.0
        %v1103 = vsel %vm1087, %v1041, 0.0
        %v1104 = vsel %vm1088, %v1043, 0.0
        %v1105 = vsel %vm1089, %v1045, 0.0
        %v1106 = vsel %vm1090, %v1047, 0.0
        %v1107 = vsel %vm1091, %v1049, 0.0
        %v1108 = vsel %vm1092, %v1051, 0.0
        %v1109 = vsel %vm1093, %v1053, 0.0
        %v1110 = vsel %vm1094, %v1055, 0.0
        %v1111 = vsel %vm1095, %v1057, 0.0
        %v1112 = vsel %vm1096, %v1059, 0.0
        %v1113 = vsel %vm1097, %v1061, 0.0
        %v1114 = vsel %vm1098, %v1063, 0.0
        %v1115 = vsel %vm1099, %v1065, 0.0
        %v1116 = vsel %vm1100, %v1067, 0.0
        %v1117 = vsel %vm1101, %v1069, 0.0
        %v1118 = vadd.f32 %v884, %v1102
        %v1119 = vadd.f32 %v885, %v1103
        %v1120 = vadd.f32 %v886, %v1104
        %v1121 = vadd.f32 %v887, %v1105
        %v1122 = vadd.f32 %v888, %v1106
        %v1123 = vadd.f32 %v889, %v1107
        %v1124 = vadd.f32 %v890, %v1108
        %v1125 = vadd.f32 %v891, %v1109
        %v1126 = vadd.f32 %v892, %v1110
        %v1127 = vadd.f32 %v893, %v1111
        %v1128 = vadd.f32 %v894, %v1112
        %v1129 = vadd.f32 %v895, %v1113
        %v1130 = vadd.f32 %v896, %v1114
        %v1131 = vadd.f32 %v897, %v1115
        %v1132 = vadd.f32 %v898, %v1116
        %v1133 = vadd.f32 %v899, %v1117
        %v1134 = vperm.slane %v284, 3
        %v1135 = vsub.f32 %v252, %v1134
        %v1136 = vsub.f32 %v253, %v1134
        %v1137 = vsub.f32 %v254, %v1134
        %v1138 = vsub.f32 %v255, %v1134
        %v1139 = vsub.f32 %v256, %v1134
        %v1140 = vsub.f32 %v257, %v1134
        %v1141 = vsub.f32 %v258, %v1134
        %v1142 = vsub.f32 %v259, %v1134
        %v1143 = vsub.f32 %v260, %v1134
        %v1144 = vsub.f32 %v261, %v1134
        %v1145 = vsub.f32 %v262, %v1134
        %v1146 = vsub.f32 %v263, %v1134
        %v1147 = vsub.f32 %v264, %v1134
        %v1148 = vsub.f32 %v265, %v1134
        %v1149 = vsub.f32 %v266, %v1134
        %v1150 = vsub.f32 %v267, %v1134
        %v1151 = vpack.c.bf16 %v1136, %v1135
        %v1152 = vpack.c.bf16 %v1138, %v1137
        %v1153 = vpack.c.bf16 %v1140, %v1139
        %v1154 = vpack.c.bf16 %v1142, %v1141
        %v1155 = vpack.c.bf16 %v1144, %v1143
        %v1156 = vpack.c.bf16 %v1146, %v1145
        %v1157 = vpack.c.bf16 %v1148, %v1147
        %v1158 = vpack.c.bf16 %v1150, %v1149
        %v1175 = vunpack.c.l.b16 %v333
        %v1176 = vunpack.c.l.b16 %v334
        %v1177 = vunpack.c.l.b16 %v335
        %v1178 = vunpack.c.l.b16 %v336
        %v1179 = vunpack.c.l.b16 %v337
        %v1180 = vunpack.c.l.b16 %v338
        %v1181 = vunpack.c.l.b16 %v339
        %v1182 = vunpack.c.l.b16 %v340
        %v1183 = vunpack.c.l.b16 %v341
        %v1184 = vunpack.c.l.b16 %v342
        %v1185 = vunpack.c.l.b16 %v343
        %v1186 = vunpack.c.l.b16 %v344
        %v1187 = vunpack.c.l.b16 %v345
        %v1188 = vunpack.c.l.b16 %v346
        %v1189 = vunpack.c.l.b16 %v347
        %v1190 = vunpack.c.l.b16 %v348
        %v1191 = vpack.c.b16 %v1176, %v1175
        %v1192 = vpack.c.b16 %v1178, %v1177
        %v1193 = vpack.c.b16 %v1180, %v1179
        %v1194 = vpack.c.b16 %v1182, %v1181
        %v1195 = vpack.c.b16 %v1184, %v1183
        %v1196 = vpack.c.b16 %v1186, %v1185
        %v1197 = vpack.c.b16 %v1188, %v1187
        %v1198 = vpack.c.b16 %v1190, %v1189
        %1207 = vmatpush.bf16.msra.mxu0 %v1198
        %1208 = vmatpush.bf16.msra.mxu0 %v1197
        %1209 = vmatpush.bf16.msra.mxu0 %v1196
        %1210 = vmatpush.bf16.msra.mxu0 %v1195
        %1211 = vmatpush.bf16.msra.mxu0 %v1194
        %1212 = vmatpush.bf16.msra.mxu0 %v1193
        %1213 = vmatpush.bf16.msra.mxu0 %v1192
        %1214 = vmatpush.bf16.msra.mxu0 %v1191
        %1215 = vmatmul.bf16.gmra.mxu0 %v1151
        %v1216 = vpop.f32.mrf.mxu0
        %v1217 = vadd.f32 0.0, %v1216
        %v1218 = vpop.f32.mrf.mxu0
        %v1219 = vadd.f32 0.0, %v1218
        %1220 = vmatmul.bf16.gmra.mxu0 %v1152
        %v1221 = vpop.f32.mrf.mxu0
        %v1222 = vadd.f32 0.0, %v1221
        %v1223 = vpop.f32.mrf.mxu0
        %v1224 = vadd.f32 0.0, %v1223
        %1225 = vmatmul.bf16.gmra.mxu0 %v1153
        %v1226 = vpop.f32.mrf.mxu0
        %v1227 = vadd.f32 0.0, %v1226
        %v1228 = vpop.f32.mrf.mxu0
        %v1229 = vadd.f32 0.0, %v1228
        %1230 = vmatmul.bf16.gmra.mxu0 %v1154
        %v1231 = vpop.f32.mrf.mxu0
        %v1232 = vadd.f32 0.0, %v1231
        %v1233 = vpop.f32.mrf.mxu0
        %v1234 = vadd.f32 0.0, %v1233
        %1235 = vmatmul.bf16.gmra.mxu0 %v1155
        %v1236 = vpop.f32.mrf.mxu0
        %v1237 = vadd.f32 0.0, %v1236
        %v1238 = vpop.f32.mrf.mxu0
        %v1239 = vadd.f32 0.0, %v1238
        %1240 = vmatmul.bf16.gmra.mxu0 %v1156
        %v1241 = vpop.f32.mrf.mxu0
        %v1242 = vadd.f32 0.0, %v1241
        %v1243 = vpop.f32.mrf.mxu0
        %v1244 = vadd.f32 0.0, %v1243
        %1245 = vmatmul.bf16.gmra.mxu0 %v1157
        %v1246 = vpop.f32.mrf.mxu0
        %v1247 = vadd.f32 0.0, %v1246
        %v1248 = vpop.f32.mrf.mxu0
        %v1249 = vadd.f32 0.0, %v1248
        %1250 = vmatmul.bf16.gmra.mxu0 %v1158
        %v1251 = vpop.f32.mrf.mxu0
        %v1252 = vadd.f32 0.0, %v1251
        %v1253 = vpop.f32.mrf.mxu0
        %v1254 = vadd.f32 0.0, %v1253
        %1255 = vdwg.mxu0
        %v1256 = vmul.f32 %v1217, %v1217
        %v1257 = vmul.f32 %v1219, %v1219
        %v1258 = vmul.f32 %v1222, %v1222
        %v1259 = vmul.f32 %v1224, %v1224
        %v1260 = vmul.f32 %v1227, %v1227
        %v1261 = vmul.f32 %v1229, %v1229
        %v1262 = vmul.f32 %v1232, %v1232
        %v1263 = vmul.f32 %v1234, %v1234
        %v1264 = vmul.f32 %v1237, %v1237
        %v1265 = vmul.f32 %v1239, %v1239
        %v1266 = vmul.f32 %v1242, %v1242
        %v1267 = vmul.f32 %v1244, %v1244
        %v1268 = vmul.f32 %v1247, %v1247
        %v1269 = vmul.f32 %v1249, %v1249
        %v1270 = vmul.f32 %v1252, %v1252
        %v1271 = vmul.f32 %v1254, %v1254
        %1272 = vadd.xlane.f32.xlu0 %v1256
        %v1273 = vpop.xlane.xlu0 %1272
        %1274 = vadd.xlane.f32.xlu0 %v1257
        %v1275 = vpop.xlane.xlu0 %1274
        %1276 = vadd.xlane.f32.xlu0 %v1258
        %v1277 = vpop.xlane.xlu0 %1276
        %1278 = vadd.xlane.f32.xlu0 %v1259
        %v1279 = vpop.xlane.xlu0 %1278
        %1280 = vadd.xlane.f32.xlu0 %v1260
        %v1281 = vpop.xlane.xlu0 %1280
        %1282 = vadd.xlane.f32.xlu0 %v1261
        %v1283 = vpop.xlane.xlu0 %1282
        %1284 = vadd.xlane.f32.xlu0 %v1262
        %v1285 = vpop.xlane.xlu0 %1284
        %1286 = vadd.xlane.f32.xlu0 %v1263
        %v1287 = vpop.xlane.xlu0 %1286
        %1288 = vadd.xlane.f32.xlu0 %v1264
        %v1289 = vpop.xlane.xlu0 %1288
        %1290 = vadd.xlane.f32.xlu0 %v1265
        %v1291 = vpop.xlane.xlu0 %1290
        %1292 = vadd.xlane.f32.xlu0 %v1266
        %v1293 = vpop.xlane.xlu0 %1292
        %1294 = vadd.xlane.f32.xlu0 %v1267
        %v1295 = vpop.xlane.xlu0 %1294
        %1296 = vadd.xlane.f32.xlu0 %v1268
        %v1297 = vpop.xlane.xlu0 %1296
        %1298 = vadd.xlane.f32.xlu0 %v1269
        %v1299 = vpop.xlane.xlu0 %1298
        %1300 = vadd.xlane.f32.xlu0 %v1270
        %v1301 = vpop.xlane.xlu0 %1300
        %1302 = vadd.xlane.f32.xlu0 %v1271
        %v1303 = vpop.xlane.xlu0 %1302
        %v1304 = vadd.f32 %v1070, %v1273
        %v1305 = vadd.f32 %v1071, %v1275
        %v1306 = vadd.f32 %v1072, %v1277
        %v1307 = vadd.f32 %v1073, %v1279
        %v1308 = vadd.f32 %v1074, %v1281
        %v1309 = vadd.f32 %v1075, %v1283
        %v1310 = vadd.f32 %v1076, %v1285
        %v1311 = vadd.f32 %v1077, %v1287
        %v1312 = vadd.f32 %v1078, %v1289
        %v1313 = vadd.f32 %v1079, %v1291
        %v1314 = vadd.f32 %v1080, %v1293
        %v1315 = vadd.f32 %v1081, %v1295
        %v1316 = vadd.f32 %v1082, %v1297
        %v1317 = vadd.f32 %v1083, %v1299
        %v1318 = vadd.f32 %v1084, %v1301
        %v1319 = vadd.f32 %v1085, %v1303
        %vm1320 = vcmp.eq.s32.totalorder %v268, 3
        %vm1321 = vcmp.eq.s32.totalorder %v269, 3
        %vm1322 = vcmp.eq.s32.totalorder %v270, 3
        %vm1323 = vcmp.eq.s32.totalorder %v271, 3
        %vm1324 = vcmp.eq.s32.totalorder %v272, 3
        %vm1325 = vcmp.eq.s32.totalorder %v273, 3
        %vm1326 = vcmp.eq.s32.totalorder %v274, 3
        %vm1327 = vcmp.eq.s32.totalorder %v275, 3
        %vm1328 = vcmp.eq.s32.totalorder %v276, 3
        %vm1329 = vcmp.eq.s32.totalorder %v277, 3
        %vm1330 = vcmp.eq.s32.totalorder %v278, 3
        %vm1331 = vcmp.eq.s32.totalorder %v279, 3
        %vm1332 = vcmp.eq.s32.totalorder %v280, 3
        %vm1333 = vcmp.eq.s32.totalorder %v281, 3
        %vm1334 = vcmp.eq.s32.totalorder %v282, 3
        %vm1335 = vcmp.eq.s32.totalorder %v283, 3
        %v1336 = vsel %vm1320, %v1273, 0.0
        %v1337 = vsel %vm1321, %v1275, 0.0
        %v1338 = vsel %vm1322, %v1277, 0.0
        %v1339 = vsel %vm1323, %v1279, 0.0
        %v1340 = vsel %vm1324, %v1281, 0.0
        %v1341 = vsel %vm1325, %v1283, 0.0
        %v1342 = vsel %vm1326, %v1285, 0.0
        %v1343 = vsel %vm1327, %v1287, 0.0
        %v1344 = vsel %vm1328, %v1289, 0.0
        %v1345 = vsel %vm1329, %v1291, 0.0
        %v1346 = vsel %vm1330, %v1293, 0.0
        %v1347 = vsel %vm1331, %v1295, 0.0
        %v1348 = vsel %vm1332, %v1297, 0.0
        %v1349 = vsel %vm1333, %v1299, 0.0
        %v1350 = vsel %vm1334, %v1301, 0.0
        %v1351 = vsel %vm1335, %v1303, 0.0
        %v1352 = vadd.f32 %v1118, %v1336
        %v1353 = vadd.f32 %v1119, %v1337
        %v1354 = vadd.f32 %v1120, %v1338
        %v1355 = vadd.f32 %v1121, %v1339
        %v1356 = vadd.f32 %v1122, %v1340
        %v1357 = vadd.f32 %v1123, %v1341
        %v1358 = vadd.f32 %v1124, %v1342
        %v1359 = vadd.f32 %v1125, %v1343
        %v1360 = vadd.f32 %v1126, %v1344
        %v1361 = vadd.f32 %v1127, %v1345
        %v1362 = vadd.f32 %v1128, %v1346
        %v1363 = vadd.f32 %v1129, %v1347
        %v1364 = vadd.f32 %v1130, %v1348
        %v1365 = vadd.f32 %v1131, %v1349
        %v1366 = vadd.f32 %v1132, %v1350
        %v1367 = vadd.f32 %v1133, %v1351
        %v1368 = vmul.f32 %v1304, %v416
        %v1369 = vmul.f32 %v1305, %v417
        %v1370 = vmul.f32 %v1306, %v418
        %v1371 = vmul.f32 %v1307, %v419
        %v1372 = vmul.f32 %v1308, %v420
        %v1373 = vmul.f32 %v1309, %v421
        %v1374 = vmul.f32 %v1310, %v422
        %v1375 = vmul.f32 %v1311, %v423
        %v1376 = vmul.f32 %v1312, %v424
        %v1377 = vmul.f32 %v1313, %v425
        %v1378 = vmul.f32 %v1314, %v426
        %v1379 = vmul.f32 %v1315, %v427
        %v1380 = vmul.f32 %v1316, %v428
        %v1381 = vmul.f32 %v1317, %v429
        %v1382 = vmul.f32 %v1318, %v430
        %v1383 = vmul.f32 %v1319, %v431
        %vm1384 = vcmask 7168
        %v1385 = vsel %vm1384, %v1368, 0.0
        %v1386 = vsel %vm1384, %v1369, 0.0
        %v1387 = vadd.f32 %v1385, %v1386
        %v1388 = vsel %vm1384, %v1370, 0.0
        %v1389 = vadd.f32 %v1387, %v1388
        %v1390 = vsel %vm1384, %v1371, 0.0
        %v1391 = vadd.f32 %v1389, %v1390
        %v1392 = vsel %vm1384, %v1372, 0.0
        %v1393 = vadd.f32 %v1391, %v1392
        %v1394 = vsel %vm1384, %v1373, 0.0
        %v1395 = vadd.f32 %v1393, %v1394
        %v1396 = vsel %vm1384, %v1374, 0.0
        %v1397 = vadd.f32 %v1395, %v1396
        %v1398 = vsel %vm1384, %v1375, 0.0
        %v1399 = vadd.f32 %v1397, %v1398
        %v1400 = vsel %vm1384, %v1376, 0.0
        %v1401 = vadd.f32 %v1399, %v1400
        %v1402 = vsel %vm1384, %v1377, 0.0
        %v1403 = vadd.f32 %v1401, %v1402
        %v1404 = vsel %vm1384, %v1378, 0.0
        %v1405 = vadd.f32 %v1403, %v1404
        %v1406 = vsel %vm1384, %v1379, 0.0
        %v1407 = vadd.f32 %v1405, %v1406
        %v1408 = vsel %vm1384, %v1380, 0.0
        %v1409 = vadd.f32 %v1407, %v1408
        %v1410 = vsel %vm1384, %v1381, 0.0
        %v1411 = vadd.f32 %v1409, %v1410
        %v1412 = vsel %vm1384, %v1382, 0.0
        %v1413 = vadd.f32 %v1411, %v1412
        %v1414 = vsel %vm1384, %v1383, 0.0
        %v1415 = vadd.f32 %v1413, %v1414
        %1416 = vadd.xlane.f32.xlu0 %v1415
        %v1417 = vpop.xlane.xlu0 %1416
        %v1418 = vrot.slane %v1417, 4
        %v1419 = vadd.f32 %v1417, %v1418
        %v1420 = vrot.slane %v1419, 2
        %v1421 = vadd.f32 %v1419, %v1420
        %v1422 = vrot.slane %v1421, 1
        %v1423 = vadd.f32 %v1421, %v1422
        %s1424 = vtos %v1423
        %v1425 = vmul.f32 %v1352, %v416
        %v1426 = vmul.f32 %v1353, %v417
        %v1427 = vmul.f32 %v1354, %v418
        %v1428 = vmul.f32 %v1355, %v419
        %v1429 = vmul.f32 %v1356, %v420
        %v1430 = vmul.f32 %v1357, %v421
        %v1431 = vmul.f32 %v1358, %v422
        %v1432 = vmul.f32 %v1359, %v423
        %v1433 = vmul.f32 %v1360, %v424
        %v1434 = vmul.f32 %v1361, %v425
        %v1435 = vmul.f32 %v1362, %v426
        %v1436 = vmul.f32 %v1363, %v427
        %v1437 = vmul.f32 %v1364, %v428
        %v1438 = vmul.f32 %v1365, %v429
        %v1439 = vmul.f32 %v1366, %v430
        %v1440 = vmul.f32 %v1367, %v431
        %v1441 = vsel %vm1384, %v1425, 0.0
        %v1442 = vsel %vm1384, %v1426, 0.0
        %v1443 = vadd.f32 %v1441, %v1442
        %v1444 = vsel %vm1384, %v1427, 0.0
        %v1445 = vadd.f32 %v1443, %v1444
        %v1446 = vsel %vm1384, %v1428, 0.0
        %v1447 = vadd.f32 %v1445, %v1446
        %v1448 = vsel %vm1384, %v1429, 0.0
        %v1449 = vadd.f32 %v1447, %v1448
        %v1450 = vsel %vm1384, %v1430, 0.0
        %v1451 = vadd.f32 %v1449, %v1450
        %v1452 = vsel %vm1384, %v1431, 0.0
        %v1453 = vadd.f32 %v1451, %v1452
        %v1454 = vsel %vm1384, %v1432, 0.0
        %v1455 = vadd.f32 %v1453, %v1454
        %v1456 = vsel %vm1384, %v1433, 0.0
        %v1457 = vadd.f32 %v1455, %v1456
        %v1458 = vsel %vm1384, %v1434, 0.0
        %v1459 = vadd.f32 %v1457, %v1458
        %v1460 = vsel %vm1384, %v1435, 0.0
        %v1461 = vadd.f32 %v1459, %v1460
        %v1462 = vsel %vm1384, %v1436, 0.0
        %v1463 = vadd.f32 %v1461, %v1462
        %v1464 = vsel %vm1384, %v1437, 0.0
        %v1465 = vadd.f32 %v1463, %v1464
        %v1466 = vsel %vm1384, %v1438, 0.0
        %v1467 = vadd.f32 %v1465, %v1466
        %v1468 = vsel %vm1384, %v1439, 0.0
        %v1469 = vadd.f32 %v1467, %v1468
        %v1470 = vsel %vm1384, %v1440, 0.0
        %v1471 = vadd.f32 %v1469, %v1470
        %1472 = vadd.xlane.f32.xlu0 %v1471
        %v1473 = vpop.xlane.xlu0 %1472
        %v1474 = vrot.slane %v1473, 4
        %v1475 = vadd.f32 %v1473, %v1474
        %v1476 = vrot.slane %v1475, 2
        %v1477 = vadd.f32 %v1475, %v1476
        %v1478 = vrot.slane %v1477, 1
        %v1479 = vadd.f32 %v1477, %v1478
        %s1480 = vtos %v1479
        %v1481 = vlaneseq
        %v1482 = vand.u32 %v1481, 127
        %vm1483 = vcmp.eq.s32.totalorder %v351, 0
        %vm1484 = vcmp.eq.s32.totalorder %v1482, 0
        %vm1485 = vmand %vm1483, %vm1484
        %vm1486 = vcmp.eq.s32.totalorder %v1482, 1
        %vm1487 = vmand %vm1483, %vm1486
        %v1488 = vstv %s1424
        %v1489 = vsel %vm1487, %v1488, 0.0
        %v1490 = vstv %s1480
        %v1491 = vsel %vm1485, %v1490, %v1489
        %1492 = vst [vmem:[%s239] sm:$0xff] %v1491
        %s1493 = sand.u32 %s122, 1
        %s1494 = scalar_lea.sflag [#allocation4], %s1493
        %s1495 = sand.u32 %s122, 1
        %s1496 = smul.addr %s1495, 8
        %s1497 = scalar_lea.vmem [#allocation7], %s1496
        // Predicated region
        $region45: #{tpu_custom_call.1} parent=35 // pred_check
          %p1498 = pneg %p132
        $region46: #{tpu_custom_call.1} parent=35 // pred_check_branch
          %1500 = sbr.rel (%p1498) target = $region48
        $region47: #{tpu_custom_call.1} parent=35 // pred_region
          %1502 = vsyncadd %s1494, 0
          %s1503 = smul.addr %s20, 8
          %s1504 = scalar_lea.hbm %s4, %s1503
          %s1506 = sshll.u32 %s1497, 4
          %s1507 = int_to_ptr.vmem [resolvable:$true] %s1506
          %s1508 = sshll.u32 %s1504, 4
          %s1509 = int_to_ptr.hbm [resolvable:$true] %s1508
          %1511 = dma.vmem_to_hbm [thread:$0]  %s1507, 128, %s1509, %s1494
        $region48: #{tpu_custom_call.1} parent=35 // pred_fallthru
          _
      $region36: #{tpu_custom_call.1} parent=5 // pred_fallthru
        _
      %p1512 = scmp.le.s32.totalorder 2, %s15
      // Predicated region
      $region49: #{tpu_custom_call.1} parent=5 // pred_check
        %p1513 = pneg %p1512
      $region50: #{tpu_custom_call.1} parent=5 // pred_check_branch
        %1515 = sbr.rel (%p1513) target = $region52
      $region51: #{tpu_custom_call.1} parent=5 // pred_region
        %s1516 = ssub.s32 %s15, 2
        // Predicated region
        $region53: #{tpu_custom_call.1} parent=51 // pred_check
          %p1517 = pneg %p138
        $region54: #{tpu_custom_call.1} parent=51 // pred_check_branch
          %1519 = sbr.rel (%p1517) target = $region56
        $region55: #{tpu_custom_call.1} parent=51 // pred_region
          %s1520 = sand.u32 %s123, 1
          %s1521 = scalar_lea.sflag [#allocation4], %s1520
          %s1522 = sand.u32 %s123, 1
          %s1523 = smul.addr %s1522, 8
          %s1524 = scalar_lea.vmem [#allocation7], %s1523
          %1526 = dma.done %s1521, 128
        $region56: #{tpu_custom_call.1} parent=51 // pred_fallthru
          _
      $region52: #{tpu_custom_call.1} parent=5 // pred_fallthru
        _
    $region6: #{tpu_custom_call.1} parent=1 // loop_footer
      %s19 = sadd.s32 1, %s15
    $region7: #{tpu_custom_call.1} parent=1 // loop_footer_branch
      %14 = sbr.rel target = $region3
    $region8: #{tpu_custom_call.1} parent=1 // loop_exit
      _
    %1527 = vsyncpa [#allocation3], 1
    %s1528 = scalar_lea.sflag [#allocation3], 1
    %1529 = vsyncpa %s1528, 1
    %1530 = vsyncpa [#allocation6], 1
    %1531 = vsyncpa [#allocation4], 1
    %s1532 = scalar_lea.sflag [#allocation4], 1
    %1533 = vsyncpa %s1532, 1

</llo_original>
